<compile_context>
chip_gen: v7x
topology: tpu7x:2x2x1
jax: 0.10.0
libtpu: 0.0.40
codegen_flags: <defaults>
</compile_context>

<pallas_src>
import jax
import jax.numpy as jnp
from jax import lax
from jax.experimental import pallas as pl
from jax.experimental.pallas import tpu as pltpu


def _gaussian_decoder_kernel(dt_ref, z_ref, w_init_ref, w1_ref, b1_ref,
                             w2_ref, b2_ref, w_out_ref,
                             sol_ref, mean_ref):
    """ODE (explicit Euler) integration with output_mean fused into the loop.

    Outputs are time-major:
      sol_ref  : (T, B, S)  ODE states at each time step
      mean_ref : (T, B, D)  w_out applied to each state while it is in vregs
    """
    T = sol_ref.shape[0]

    # Hoist weight / bias loads out of the recurrence (JAX does not CSE
    # repeated ref loads / broadcasts inside the loop body).
    w1 = w1_ref[...]
    b1 = b1_ref[...]
    w2 = w2_ref[...]
    b2 = b2_ref[...]
    w_out = w_out_ref[...]

    # Map latent z -> initial ODE state (latent_dim -> ode_state_dim).
    x0 = jnp.dot(z_ref[...], w_init_ref[...], preferred_element_type=jnp.float32)

    # Fixed-step explicit-Euler integration of dx/dt = MLP(x) over `times`.
    # TODO(synk): OdeModel / adjoint & adaptive solvers from the original config
    # are unspecified in the reference; a standard Euler latent neural ODE is used.
    def body(t, x):
        sol_ref[t] = x                                     # record state at times[t]
        mean_ref[t] = jnp.dot(x, w_out,                    # fused output_mean
                              preferred_element_type=jnp.float32)
        dt = dt_ref[t]                                     # precomputed step size (SMEM)
        h = jnp.tanh(jnp.dot(x, w1,
                             preferred_element_type=jnp.float32) + b1)
        dx = jnp.dot(h, w2, preferred_element_type=jnp.float32) + b2
        return x + dt * dx

    # T is tiny & static: fully unroll so the LLO scheduler sees across steps.
    lax.fori_loop(0, T, body, x0, unroll=True)


def gaussian_decoder_forward(z, times, params):
    B = z.shape[0]
    T = times.shape[0]
    S = params["w_init"].shape[1]
    D = params["w_out"].shape[1]

    # dt[t] = times[min(t+1, T-1)] - times[t]  (last step = 0), precomputed here
    # so the kernel's serial scalar path does a single sld per step.
    dt = jnp.diff(times, append=times[-1]).astype(jnp.float32)

    vmem = pl.BlockSpec(memory_space=pltpu.MemorySpace.VMEM)
    smem = pl.BlockSpec(memory_space=pltpu.MemorySpace.SMEM)

    sol_tbs, mean_tbd = pl.pallas_call(
        _gaussian_decoder_kernel,
        out_shape=(
            jax.ShapeDtypeStruct((T, B, S), jnp.float32),   # solution, time-major
            jax.ShapeDtypeStruct((T, B, D), jnp.float32),   # mean, time-major
        ),
        in_specs=[smem] + [vmem] * 7,
        out_specs=(vmem, vmem),
    )(dt, z, params["w_init"], params["w1"], params["b1"],
      params["w2"], params["b2"], params["w_out"])

    # Pure layout glue (fusable by XLA) — kept out of the kernel.
    solution = jnp.transpose(sol_tbs, (1, 0, 2))            # (B, T, S)
    # torch: torch.squeeze(self.output_mean(solution)).permute(0, 2, 1)
    mean = jnp.transpose(mean_tbd, (1, 2, 0))               # (B, D, T)
    # std = ones_like(mean) * softplus(constant_std): no kernel-state dependence.
    std = jnp.broadcast_to(jax.nn.softplus(params["constant_std"])[None],
                           mean.shape)                      # (B, D, T)
    return solution, mean, std


def reference_forward(z, times, params):
    """Pure-JAX reference with identical math (for correctness check)."""
    T = times.shape[0]
    x = z @ params["w_init"]
    sols = []
    for t in range(T):
        sols.append(x)
        t_next = min(t + 1, T - 1)
        dt = times[t_next] - times[t]
        h = jnp.tanh(x @ params["w1"] + params["b1"])
        dx = h @ params["w2"] + params["b2"]
        x = x + dt * dx
    sol = jnp.stack(sols, axis=1)                            # (B, T, S)
    mean = jnp.transpose(sol @ params["w_out"], (0, 2, 1))   # (B, D, T)
    std = jnp.broadcast_to(jax.nn.softplus(params["constant_std"])[None],
                           mean.shape)
    return sol, mean, std


def init_params(key, latent_dim, ode_state_dim, ode_hidden_dim, obs_dim, n_times,
                constant_std=0.1):
    ks = jax.random.split(key, 6)
    f32 = jnp.float32
    return {
        "w_init": jax.random.normal(ks[0], (latent_dim, ode_state_dim), f32)
                  / jnp.sqrt(f32(latent_dim)),
        "w1": jax.random.normal(ks[1], (ode_state_dim, ode_hidden_dim), f32)
              / jnp.sqrt(f32(ode_state_dim)),
        "b1": 0.01 * jax.random.normal(ks[2], (1, ode_hidden_dim), f32),
        "w2": jax.random.normal(ks[3], (ode_hidden_dim, ode_state_dim), f32)
              / jnp.sqrt(f32(ode_hidden_dim)),
        "b2": 0.01 * jax.random.normal(ks[4], (1, ode_state_dim), f32),
        "w_out": jax.random.normal(ks[5], (ode_state_dim, obs_dim), f32)
                 / jnp.sqrt(f32(ode_state_dim)),
        # torch: nn.Parameter(torch.ones(obs_dim, len(times)) * config.constant_std)
        "constant_std": jnp.ones((obs_dim, n_times), f32) * constant_std,
    }


if __name__ == "__main__":
    B, latent_dim = 2, 8
    ode_state_dim, ode_hidden_dim, obs_dim = 16, 32, 4
    n_times = 8

    key = jax.random.PRNGKey(0)
    kz, kp = jax.random.split(key)
    z = jax.random.normal(kz, (B, latent_dim), jnp.float32)
    times = jnp.linspace(0.0, 1.0, n_times, dtype=jnp.float32)
    params = init_params(kp, latent_dim, ode_state_dim, ode_hidden_dim,
                         obs_dim, n_times)

    sol, mean, std = gaussian_decoder_forward(z, times, params)
    jax.block_until_ready((sol, mean, std))

    sol_r, mean_r, std_r = reference_forward(z, times, params)
    assert sol.shape == (B, n_times, ode_state_dim)
    assert mean.shape == (B, obs_dim, n_times)
    assert std.shape == (B, obs_dim, n_times)
    assert jnp.allclose(sol, sol_r, atol=1e-3, rtol=1e-3)
    assert jnp.allclose(mean, mean_r, atol=1e-3, rtol=1e-3)
    assert jnp.allclose(std, std_r, atol=1e-3, rtol=1e-3)

    # TODO(synk): torch applies torch.squeeze before permute, so shapes diverge
    # from torch only when B==1 or obs_dim==1; standard batched shapes kept here.
    print("KERNEL_OK")
</pallas_src>

<mosaic_0001>
module attributes {stable_mosaic.version = 11 : i64} {
  func.func @_gaussian_decoder_kernel(%arg0: memref<8xf32, #tpu.memory_space<smem>>, %arg1: memref<2x8xf32, #tpu.memory_space<vmem>>, %arg2: memref<8x16xf32, #tpu.memory_space<vmem>>, %arg3: memref<16x32xf32, #tpu.memory_space<vmem>>, %arg4: memref<1x32xf32, #tpu.memory_space<vmem>>, %arg5: memref<32x16xf32, #tpu.memory_space<vmem>>, %arg6: memref<1x16xf32, #tpu.memory_space<vmem>>, %arg7: memref<16x4xf32, #tpu.memory_space<vmem>>, %arg8: memref<8x2x16xf32, #tpu.memory_space<vmem>>, %arg9: memref<8x2x4xf32, #tpu.memory_space<vmem>>) attributes {dimension_semantics = [], scalar_prefetch = 0 : i64, scratch_operands = 0 : i64, tpu.core_type = #tpu.core_type<tc>} {
    %c0 = arith.constant 0 : index
    %c0_0 = arith.constant 0 : index
    %0 = vector.load %arg3[%c0, %c0_0] : memref<16x32xf32, #tpu.memory_space<vmem>>, vector<16x32xf32>
    %c0_1 = arith.constant 0 : index
    %c0_2 = arith.constant 0 : index
    %1 = vector.load %arg4[%c0_1, %c0_2] : memref<1x32xf32, #tpu.memory_space<vmem>>, vector<1x32xf32>
    %c0_3 = arith.constant 0 : index
    %c0_4 = arith.constant 0 : index
    %2 = vector.load %arg5[%c0_3, %c0_4] : memref<32x16xf32, #tpu.memory_space<vmem>>, vector<32x16xf32>
    %c0_5 = arith.constant 0 : index
    %c0_6 = arith.constant 0 : index
    %3 = vector.load %arg6[%c0_5, %c0_6] : memref<1x16xf32, #tpu.memory_space<vmem>>, vector<1x16xf32>
    %c0_7 = arith.constant 0 : index
    %c0_8 = arith.constant 0 : index
    %4 = vector.load %arg7[%c0_7, %c0_8] : memref<16x4xf32, #tpu.memory_space<vmem>>, vector<16x4xf32>
    %c0_9 = arith.constant 0 : index
    %c0_10 = arith.constant 0 : index
    %5 = vector.load %arg1[%c0_9, %c0_10] : memref<2x8xf32, #tpu.memory_space<vmem>>, vector<2x8xf32>
    %c0_11 = arith.constant 0 : index
    %c0_12 = arith.constant 0 : index
    %6 = vector.load %arg2[%c0_11, %c0_12] : memref<8x16xf32, #tpu.memory_space<vmem>>, vector<8x16xf32>
    %cst = arith.constant dense<0.000000e+00> : vector<2x16xf32>
    %7 = tpu.matmul %5, %6, %cst {dimension_numbers = #tpu.dot_dimension_numbers<[1], [0], [0], [1], [0, 0, 1, 1], [], []>} : vector<2x8xf32>, vector<8x16xf32>, vector<2x16xf32> -> vector<2x16xf32>
    %c0_i32 = arith.constant 0 : i32
    %8 = arith.index_cast %c0_i32 : i32 to index
    %c0_13 = arith.constant 0 : index
    %c0_14 = arith.constant 0 : index
    %9 = vector.load %arg8[%8, %c0_13, %c0_14] : memref<8x2x16xf32, #tpu.memory_space<vmem>>, vector<1x2x16xf32>
    %10 = vector.shape_cast %9 : vector<1x2x16xf32> to vector<2x16xf32>
    %11 = vector.shape_cast %7 : vector<2x16xf32> to vector<1x2x16xf32>
    tpu.vector_store %arg8[%8, %c0_13, %c0_14], %11 {strides = array<i32>} : memref<8x2x16xf32, #tpu.memory_space<vmem>>, vector<1x2x16xf32>,
    %cst_15 = arith.constant dense<0.000000e+00> : vector<2x4xf32>
    %12 = tpu.matmul %7, %4, %cst_15 {dimension_numbers = #tpu.dot_dimension_numbers<[1], [0], [0], [1], [0, 0, 1, 1], [], []>} : vector<2x16xf32>, vector<16x4xf32>, vector<2x4xf32> -> vector<2x4xf32>
    %13 = arith.index_cast %c0_i32 : i32 to index
    %c0_16 = arith.constant 0 : index
    %c0_17 = arith.constant 0 : index
    %14 = vector.load %arg9[%13, %c0_16, %c0_17] : memref<8x2x4xf32, #tpu.memory_space<vmem>>, vector<1x2x4xf32>
    %15 = vector.shape_cast %14 : vector<1x2x4xf32> to vector<2x4xf32>
    %16 = vector.shape_cast %12 : vector<2x4xf32> to vector<1x2x4xf32>
    tpu.vector_store %arg9[%13, %c0_16, %c0_17], %16 {strides = array<i32>} : memref<8x2x4xf32, #tpu.memory_space<vmem>>, vector<1x2x4xf32>,
    %17 = arith.index_cast %c0_i32 : i32 to index
    %18 = memref.load %arg0[%17] : memref<8xf32, #tpu.memory_space<smem>>
    %cst_18 = arith.constant dense<0.000000e+00> : vector<2x32xf32>
    %19 = tpu.matmul %7, %0, %cst_18 {dimension_numbers = #tpu.dot_dimension_numbers<[1], [0], [0], [1], [0, 0, 1, 1], [], []>} : vector<2x16xf32>, vector<16x32xf32>, vector<2x32xf32> -> vector<2x32xf32>
    %20 = vector.broadcast %1 : vector<1x32xf32> to vector<2x32xf32>
    %21 = arith.addf %19, %20 : vector<2x32xf32>
    %22 = math.tanh %21 : vector<2x32xf32>
    %cst_19 = arith.constant dense<0.000000e+00> : vector<2x16xf32>
    %23 = tpu.matmul %22, %2, %cst_19 {dimension_numbers = #tpu.dot_dimension_numbers<[1], [0], [0], [1], [0, 0, 1, 1], [], []>} : vector<2x32xf32>, vector<32x16xf32>, vector<2x16xf32> -> vector<2x16xf32>
    %24 = vector.broadcast %3 : vector<1x16xf32> to vector<2x16xf32>
    %25 = arith.addf %23, %24 : vector<2x16xf32>
    %26 = vector.broadcast %18 : f32 to vector<2x16xf32>
    %27 = arith.mulf %26, %25 : vector<2x16xf32>
    %28 = arith.addf %7, %27 : vector<2x16xf32>
    %c1_i32 = arith.constant 1 : i32
    %29 = arith.index_cast %c1_i32 : i32 to index
    %c0_20 = arith.constant 0 : index
    %c0_21 = arith.constant 0 : index
    %30 = vector.load %arg8[%29, %c0_20, %c0_21] : memref<8x2x16xf32, #tpu.memory_space<vmem>>, vector<1x2x16xf32>
    %31 = vector.shape_cast %30 : vector<1x2x16xf32> to vector<2x16xf32>
    %32 = vector.shape_cast %28 : vector<2x16xf32> to vector<1x2x16xf32>
    tpu.vector_store %arg8[%29, %c0_20, %c0_21], %32 {strides = array<i32>} : memref<8x2x16xf32, #tpu.memory_space<vmem>>, vector<1x2x16xf32>,
    %cst_22 = arith.constant dense<0.000000e+00> : vector<2x4xf32>
    %33 = tpu.matmul %28, %4, %cst_22 {dimension_numbers = #tpu.dot_dimension_numbers<[1], [0], [0], [1], [0, 0, 1, 1], [], []>} : vector<2x16xf32>, vector<16x4xf32>, vector<2x4xf32> -> vector<2x4xf32>
    %34 = arith.index_cast %c1_i32 : i32 to index
    %c0_23 = arith.constant 0 : index
    %c0_24 = arith.constant 0 : index
    %35 = vector.load %arg9[%34, %c0_23, %c0_24] : memref<8x2x4xf32, #tpu.memory_space<vmem>>, vector<1x2x4xf32>
    %36 = vector.shape_cast %35 : vector<1x2x4xf32> to vector<2x4xf32>
    %37 = vector.shape_cast %33 : vector<2x4xf32> to vector<1x2x4xf32>
    tpu.vector_store %arg9[%34, %c0_23, %c0_24], %37 {strides = array<i32>} : memref<8x2x4xf32, #tpu.memory_space<vmem>>, vector<1x2x4xf32>,
    %38 = arith.index_cast %c1_i32 : i32 to index
    %39 = memref.load %arg0[%38] : memref<8xf32, #tpu.memory_space<smem>>
    %cst_25 = arith.constant dense<0.000000e+00> : vector<2x32xf32>
    %40 = tpu.matmul %28, %0, %cst_25 {dimension_numbers = #tpu.dot_dimension_numbers<[1], [0], [0], [1], [0, 0, 1, 1], [], []>} : vector<2x16xf32>, vector<16x32xf32>, vector<2x32xf32> -> vector<2x32xf32>
    %41 = vector.broadcast %1 : vector<1x32xf32> to vector<2x32xf32>
    %42 = arith.addf %40, %41 : vector<2x32xf32>
    %43 = math.tanh %42 : vector<2x32xf32>
    %cst_26 = arith.constant dense<0.000000e+00> : vector<2x16xf32>
    %44 = tpu.matmul %43, %2, %cst_26 {dimension_numbers = #tpu.dot_dimension_numbers<[1], [0], [0], [1], [0, 0, 1, 1], [], []>} : vector<2x32xf32>, vector<32x16xf32>, vector<2x16xf32> -> vector<2x16xf32>
    %45 = vector.broadcast %3 : vector<1x16xf32> to vector<2x16xf32>
    %46 = arith.addf %44, %45 : vector<2x16xf32>
    %47 = vector.broadcast %39 : f32 to vector<2x16xf32>
    %48 = arith.mulf %47, %46 : vector<2x16xf32>
    %49 = arith.addf %28, %48 : vector<2x16xf32>
    %c2_i32 = arith.constant 2 : i32
    %50 = arith.index_cast %c2_i32 : i32 to index
    %c0_27 = arith.constant 0 : index
    %c0_28 = arith.constant 0 : index
    %51 = vector.load %arg8[%50, %c0_27, %c0_28] : memref<8x2x16xf32, #tpu.memory_space<vmem>>, vector<1x2x16xf32>
    %52 = vector.shape_cast %51 : vector<1x2x16xf32> to vector<2x16xf32>
    %53 = vector.shape_cast %49 : vector<2x16xf32> to vector<1x2x16xf32>
    tpu.vector_store %arg8[%50, %c0_27, %c0_28], %53 {strides = array<i32>} : memref<8x2x16xf32, #tpu.memory_space<vmem>>, vector<1x2x16xf32>,
    %cst_29 = arith.constant dense<0.000000e+00> : vector<2x4xf32>
    %54 = tpu.matmul %49, %4, %cst_29 {dimension_numbers = #tpu.dot_dimension_numbers<[1], [0], [0], [1], [0, 0, 1, 1], [], []>} : vector<2x16xf32>, vector<16x4xf32>, vector<2x4xf32> -> vector<2x4xf32>
    %55 = arith.index_cast %c2_i32 : i32 to index
    %c0_30 = arith.constant 0 : index
    %c0_31 = arith.constant 0 : index
    %56 = vector.load %arg9[%55, %c0_30, %c0_31] : memref<8x2x4xf32, #tpu.memory_space<vmem>>, vector<1x2x4xf32>
    %57 = vector.shape_cast %56 : vector<1x2x4xf32> to vector<2x4xf32>
    %58 = vector.shape_cast %54 : vector<2x4xf32> to vector<1x2x4xf32>
    tpu.vector_store %arg9[%55, %c0_30, %c0_31], %58 {strides = array<i32>} : memref<8x2x4xf32, #tpu.memory_space<vmem>>, vector<1x2x4xf32>,
    %59 = arith.index_cast %c2_i32 : i32 to index
    %60 = memref.load %arg0[%59] : memref<8xf32, #tpu.memory_space<smem>>
    %cst_32 = arith.constant dense<0.000000e+00> : vector<2x32xf32>
    %61 = tpu.matmul %49, %0, %cst_32 {dimension_numbers = #tpu.dot_dimension_numbers<[1], [0], [0], [1], [0, 0, 1, 1], [], []>} : vector<2x16xf32>, vector<16x32xf32>, vector<2x32xf32> -> vector<2x32xf32>
    %62 = vector.broadcast %1 : vector<1x32xf32> to vector<2x32xf32>
    %63 = arith.addf %61, %62 : vector<2x32xf32>
    %64 = math.tanh %63 : vector<2x32xf32>
    %cst_33 = arith.constant dense<0.000000e+00> : vector<2x16xf32>
    %65 = tpu.matmul %64, %2, %cst_33 {dimension_numbers = #tpu.dot_dimension_numbers<[1], [0], [0], [1], [0, 0, 1, 1], [], []>} : vector<2x32xf32>, vector<32x16xf32>, vector<2x16xf32> -> vector<2x16xf32>
    %66 = vector.broadcast %3 : vector<1x16xf32> to vector<2x16xf32>
    %67 = arith.addf %65, %66 : vector<2x16xf32>
    %68 = vector.broadcast %60 : f32 to vector<2x16xf32>
    %69 = arith.mulf %68, %67 : vector<2x16xf32>
    %70 = arith.addf %49, %69 : vector<2x16xf32>
    %c3_i32 = arith.constant 3 : i32
    %71 = arith.index_cast %c3_i32 : i32 to index
    %c0_34 = arith.constant 0 : index
    %c0_35 = arith.constant 0 : index
    %72 = vector.load %arg8[%71, %c0_34, %c0_35] : memref<8x2x16xf32, #tpu.memory_space<vmem>>, vector<1x2x16xf32>
    %73 = vector.shape_cast %72 : vector<1x2x16xf32> to vector<2x16xf32>
    %74 = vector.shape_cast %70 : vector<2x16xf32> to vector<1x2x16xf32>
    tpu.vector_store %arg8[%71, %c0_34, %c0_35], %74 {strides = array<i32>} : memref<8x2x16xf32, #tpu.memory_space<vmem>>, vector<1x2x16xf32>,
    %cst_36 = arith.constant dense<0.000000e+00> : vector<2x4xf32>
    %75 = tpu.matmul %70, %4, %cst_36 {dimension_numbers = #tpu.dot_dimension_numbers<[1], [0], [0], [1], [0, 0, 1, 1], [], []>} : vector<2x16xf32>, vector<16x4xf32>, vector<2x4xf32> -> vector<2x4xf32>
    %76 = arith.index_cast %c3_i32 : i32 to index
    %c0_37 = arith.constant 0 : index
    %c0_38 = arith.constant 0 : index
    %77 = vector.load %arg9[%76, %c0_37, %c0_38] : memref<8x2x4xf32, #tpu.memory_space<vmem>>, vector<1x2x4xf32>
    %78 = vector.shape_cast %77 : vector<1x2x4xf32> to vector<2x4xf32>
    %79 = vector.shape_cast %75 : vector<2x4xf32> to vector<1x2x4xf32>
    tpu.vector_store %arg9[%76, %c0_37, %c0_38], %79 {strides = array<i32>} : memref<8x2x4xf32, #tpu.memory_space<vmem>>, vector<1x2x4xf32>,
    %80 = arith.index_cast %c3_i32 : i32 to index
    %81 = memref.load %arg0[%80] : memref<8xf32, #tpu.memory_space<smem>>
    %cst_39 = arith.constant dense<0.000000e+00> : vector<2x32xf32>
    %82 = tpu.matmul %70, %0, %cst_39 {dimension_numbers = #tpu.dot_dimension_numbers<[1], [0], [0], [1], [0, 0, 1, 1], [], []>} : vector<2x16xf32>, vector<16x32xf32>, vector<2x32xf32> -> vector<2x32xf32>
    %83 = vector.broadcast %1 : vector<1x32xf32> to vector<2x32xf32>
    %84 = arith.addf %82, %83 : vector<2x32xf32>
    %85 = math.tanh %84 : vector<2x32xf32>
    %cst_40 = arith.constant dense<0.000000e+00> : vector<2x16xf32>
    %86 = tpu.matmul %85, %2, %cst_40 {dimension_numbers = #tpu.dot_dimension_numbers<[1], [0], [0], [1], [0, 0, 1, 1], [], []>} : vector<2x32xf32>, vector<32x16xf32>, vector<2x16xf32> -> vector<2x16xf32>
    %87 = vector.broadcast %3 : vector<1x16xf32> to vector<2x16xf32>
    %88 = arith.addf %86, %87 : vector<2x16xf32>
    %89 = vector.broadcast %81 : f32 to vector<2x16xf32>
    %90 = arith.mulf %89, %88 : vector<2x16xf32>
    %91 = arith.addf %70, %90 : vector<2x16xf32>
    %c4_i32 = arith.constant 4 : i32
    %92 = arith.index_cast %c4_i32 : i32 to index
    %c0_41 = arith.constant 0 : index
    %c0_42 = arith.constant 0 : index
    %93 = vector.load %arg8[%92, %c0_41, %c0_42] : memref<8x2x16xf32, #tpu.memory_space<vmem>>, vector<1x2x16xf32>
    %94 = vector.shape_cast %93 : vector<1x2x16xf32> to vector<2x16xf32>
    %95 = vector.shape_cast %91 : vector<2x16xf32> to vector<1x2x16xf32>
    tpu.vector_store %arg8[%92, %c0_41, %c0_42], %95 {strides = array<i32>} : memref<8x2x16xf32, #tpu.memory_space<vmem>>, vector<1x2x16xf32>,
    %cst_43 = arith.constant dense<0.000000e+00> : vector<2x4xf32>
    %96 = tpu.matmul %91, %4, %cst_43 {dimension_numbers = #tpu.dot_dimension_numbers<[1], [0], [0], [1], [0, 0, 1, 1], [], []>} : vector<2x16xf32>, vector<16x4xf32>, vector<2x4xf32> -> vector<2x4xf32>
    %97 = arith.index_cast %c4_i32 : i32 to index
    %c0_44 = arith.constant 0 : index
    %c0_45 = arith.constant 0 : index
    %98 = vector.load %arg9[%97, %c0_44, %c0_45] : memref<8x2x4xf32, #tpu.memory_space<vmem>>, vector<1x2x4xf32>
    %99 = vector.shape_cast %98 : vector<1x2x4xf32> to vector<2x4xf32>
    %100 = vector.shape_cast %96 : vector<2x4xf32> to vector<1x2x4xf32>
    tpu.vector_store %arg9[%97, %c0_44, %c0_45], %100 {strides = array<i32>} : memref<8x2x4xf32, #tpu.memory_space<vmem>>, vector<1x2x4xf32>,
    %101 = arith.index_cast %c4_i32 : i32 to index
    %102 = memref.load %arg0[%101] : memref<8xf32, #tpu.memory_space<smem>>
    %cst_46 = arith.constant dense<0.000000e+00> : vector<2x32xf32>
    %103 = tpu.matmul %91, %0, %cst_46 {dimension_numbers = #tpu.dot_dimension_numbers<[1], [0], [0], [1], [0, 0, 1, 1], [], []>} : vector<2x16xf32>, vector<16x32xf32>, vector<2x32xf32> -> vector<2x32xf32>
    %104 = vector.broadcast %1 : vector<1x32xf32> to vector<2x32xf32>
    %105 = arith.addf %103, %104 : vector<2x32xf32>
    %106 = math.tanh %105 : vector<2x32xf32>
    %cst_47 = arith.constant dense<0.000000e+00> : vector<2x16xf32>
    %107 = tpu.matmul %106, %2, %cst_47 {dimension_numbers = #tpu.dot_dimension_numbers<[1], [0], [0], [1], [0, 0, 1, 1], [], []>} : vector<2x32xf32>, vector<32x16xf32>, vector<2x16xf32> -> vector<2x16xf32>
    %108 = vector.broadcast %3 : vector<1x16xf32> to vector<2x16xf32>
    %109 = arith.addf %107, %108 : vector<2x16xf32>
    %110 = vector.broadcast %102 : f32 to vector<2x16xf32>
    %111 = arith.mulf %110, %109 : vector<2x16xf32>
    %112 = arith.addf %91, %111 : vector<2x16xf32>
    %c5_i32 = arith.constant 5 : i32
    %113 = arith.index_cast %c5_i32 : i32 to index
    %c0_48 = arith.constant 0 : index
    %c0_49 = arith.constant 0 : index
    %114 = vector.load %arg8[%113, %c0_48, %c0_49] : memref<8x2x16xf32, #tpu.memory_space<vmem>>, vector<1x2x16xf32>
    %115 = vector.shape_cast %114 : vector<1x2x16xf32> to vector<2x16xf32>
    %116 = vector.shape_cast %112 : vector<2x16xf32> to vector<1x2x16xf32>
    tpu.vector_store %arg8[%113, %c0_48, %c0_49], %116 {strides = array<i32>} : memref<8x2x16xf32, #tpu.memory_space<vmem>>, vector<1x2x16xf32>,
    %cst_50 = arith.constant dense<0.000000e+00> : vector<2x4xf32>
    %117 = tpu.matmul %112, %4, %cst_50 {dimension_numbers = #tpu.dot_dimension_numbers<[1], [0], [0], [1], [0, 0, 1, 1], [], []>} : vector<2x16xf32>, vector<16x4xf32>, vector<2x4xf32> -> vector<2x4xf32>
    %118 = arith.index_cast %c5_i32 : i32 to index
    %c0_51 = arith.constant 0 : index
    %c0_52 = arith.constant 0 : index
    %119 = vector.load %arg9[%118, %c0_51, %c0_52] : memref<8x2x4xf32, #tpu.memory_space<vmem>>, vector<1x2x4xf32>
    %120 = vector.shape_cast %119 : vector<1x2x4xf32> to vector<2x4xf32>
    %121 = vector.shape_cast %117 : vector<2x4xf32> to vector<1x2x4xf32>
    tpu.vector_store %arg9[%118, %c0_51, %c0_52], %121 {strides = array<i32>} : memref<8x2x4xf32, #tpu.memory_space<vmem>>, vector<1x2x4xf32>,
    %122 = arith.index_cast %c5_i32 : i32 to index
    %123 = memref.load %arg0[%122] : memref<8xf32, #tpu.memory_space<smem>>
    %cst_53 = arith.constant dense<0.000000e+00> : vector<2x32xf32>
    %124 = tpu.matmul %112, %0, %cst_53 {dimension_numbers = #tpu.dot_dimension_numbers<[1], [0], [0], [1], [0, 0, 1, 1], [], []>} : vector<2x16xf32>, vector<16x32xf32>, vector<2x32xf32> -> vector<2x32xf32>
    %125 = vector.broadcast %1 : vector<1x32xf32> to vector<2x32xf32>
    %126 = arith.addf %124, %125 : vector<2x32xf32>
    %127 = math.tanh %126 : vector<2x32xf32>
    %cst_54 = arith.constant dense<0.000000e+00> : vector<2x16xf32>
    %128 = tpu.matmul %127, %2, %cst_54 {dimension_numbers = #tpu.dot_dimension_numbers<[1], [0], [0], [1], [0, 0, 1, 1], [], []>} : vector<2x32xf32>, vector<32x16xf32>, vector<2x16xf32> -> vector<2x16xf32>
    %129 = vector.broadcast %3 : vector<1x16xf32> to vector<2x16xf32>
    %130 = arith.addf %128, %129 : vector<2x16xf32>
    %131 = vector.broadcast %123 : f32 to vector<2x16xf32>
    %132 = arith.mulf %131, %130 : vector<2x16xf32>
    %133 = arith.addf %112, %132 : vector<2x16xf32>
    %c6_i32 = arith.constant 6 : i32
    %134 = arith.index_cast %c6_i32 : i32 to index
    %c0_55 = arith.constant 0 : index
    %c0_56 = arith.constant 0 : index
    %135 = vector.load %arg8[%134, %c0_55, %c0_56] : memref<8x2x16xf32, #tpu.memory_space<vmem>>, vector<1x2x16xf32>
    %136 = vector.shape_cast %135 : vector<1x2x16xf32> to vector<2x16xf32>
    %137 = vector.shape_cast %133 : vector<2x16xf32> to vector<1x2x16xf32>
    tpu.vector_store %arg8[%134, %c0_55, %c0_56], %137 {strides = array<i32>} : memref<8x2x16xf32, #tpu.memory_space<vmem>>, vector<1x2x16xf32>,
    %cst_57 = arith.constant dense<0.000000e+00> : vector<2x4xf32>
    %138 = tpu.matmul %133, %4, %cst_57 {dimension_numbers = #tpu.dot_dimension_numbers<[1], [0], [0], [1], [0, 0, 1, 1], [], []>} : vector<2x16xf32>, vector<16x4xf32>, vector<2x4xf32> -> vector<2x4xf32>
    %139 = arith.index_cast %c6_i32 : i32 to index
    %c0_58 = arith.constant 0 : index
    %c0_59 = arith.constant 0 : index
    %140 = vector.load %arg9[%139, %c0_58, %c0_59] : memref<8x2x4xf32, #tpu.memory_space<vmem>>, vector<1x2x4xf32>
    %141 = vector.shape_cast %140 : vector<1x2x4xf32> to vector<2x4xf32>
    %142 = vector.shape_cast %138 : vector<2x4xf32> to vector<1x2x4xf32>
    tpu.vector_store %arg9[%139, %c0_58, %c0_59], %142 {strides = array<i32>} : memref<8x2x4xf32, #tpu.memory_space<vmem>>, vector<1x2x4xf32>,
    %143 = arith.index_cast %c6_i32 : i32 to index
    %144 = memref.load %arg0[%143] : memref<8xf32, #tpu.memory_space<smem>>
    %cst_60 = arith.constant dense<0.000000e+00> : vector<2x32xf32>
    %145 = tpu.matmul %133, %0, %cst_60 {dimension_numbers = #tpu.dot_dimension_numbers<[1], [0], [0], [1], [0, 0, 1, 1], [], []>} : vector<2x16xf32>, vector<16x32xf32>, vector<2x32xf32> -> vector<2x32xf32>
    %146 = vector.broadcast %1 : vector<1x32xf32> to vector<2x32xf32>
    %147 = arith.addf %145, %146 : vector<2x32xf32>
    %148 = math.tanh %147 : vector<2x32xf32>
    %cst_61 = arith.constant dense<0.000000e+00> : vector<2x16xf32>
    %149 = tpu.matmul %148, %2, %cst_61 {dimension_numbers = #tpu.dot_dimension_numbers<[1], [0], [0], [1], [0, 0, 1, 1], [], []>} : vector<2x32xf32>, vector<32x16xf32>, vector<2x16xf32> -> vector<2x16xf32>
    %150 = vector.broadcast %3 : vector<1x16xf32> to vector<2x16xf32>
    %151 = arith.addf %149, %150 : vector<2x16xf32>
    %152 = vector.broadcast %144 : f32 to vector<2x16xf32>
    %153 = arith.mulf %152, %151 : vector<2x16xf32>
    %154 = arith.addf %133, %153 : vector<2x16xf32>
    %c7_i32 = arith.constant 7 : i32
    %155 = arith.index_cast %c7_i32 : i32 to index
    %c0_62 = arith.constant 0 : index
    %c0_63 = arith.constant 0 : index
    %156 = vector.load %arg8[%155, %c0_62, %c0_63] : memref<8x2x16xf32, #tpu.memory_space<vmem>>, vector<1x2x16xf32>
    %157 = vector.shape_cast %156 : vector<1x2x16xf32> to vector<2x16xf32>
    %158 = vector.shape_cast %154 : vector<2x16xf32> to vector<1x2x16xf32>
    tpu.vector_store %arg8[%155, %c0_62, %c0_63], %158 {strides = array<i32>} : memref<8x2x16xf32, #tpu.memory_space<vmem>>, vector<1x2x16xf32>,
    %cst_64 = arith.constant dense<0.000000e+00> : vector<2x4xf32>
    %159 = tpu.matmul %154, %4, %cst_64 {dimension_numbers = #tpu.dot_dimension_numbers<[1], [0], [0], [1], [0, 0, 1, 1], [], []>} : vector<2x16xf32>, vector<16x4xf32>, vector<2x4xf32> -> vector<2x4xf32>
    %160 = arith.index_cast %c7_i32 : i32 to index
    %c0_65 = arith.constant 0 : index
    %c0_66 = arith.constant 0 : index
    %161 = vector.load %arg9[%160, %c0_65, %c0_66] : memref<8x2x4xf32, #tpu.memory_space<vmem>>, vector<1x2x4xf32>
    %162 = vector.shape_cast %161 : vector<1x2x4xf32> to vector<2x4xf32>
    %163 = vector.shape_cast %159 : vector<2x4xf32> to vector<1x2x4xf32>
    tpu.vector_store %arg9[%160, %c0_65, %c0_66], %163 {strides = array<i32>} : memref<8x2x4xf32, #tpu.memory_space<vmem>>, vector<1x2x4xf32>,
    %164 = arith.index_cast %c7_i32 : i32 to index
    %165 = memref.load %arg0[%164] : memref<8xf32, #tpu.memory_space<smem>>
    %cst_67 = arith.constant dense<0.000000e+00> : vector<2x32xf32>
    %166 = tpu.matmul %154, %0, %cst_67 {dimension_numbers = #tpu.dot_dimension_numbers<[1], [0], [0], [1], [0, 0, 1, 1], [], []>} : vector<2x16xf32>, vector<16x32xf32>, vector<2x32xf32> -> vector<2x32xf32>
    %167 = vector.broadcast %1 : vector<1x32xf32> to vector<2x32xf32>
    %168 = arith.addf %166, %167 : vector<2x32xf32>
    %169 = math.tanh %168 : vector<2x32xf32>
    %cst_68 = arith.constant dense<0.000000e+00> : vector<2x16xf32>
    %170 = tpu.matmul %169, %2, %cst_68 {dimension_numbers = #tpu.dot_dimension_numbers<[1], [0], [0], [1], [0, 0, 1, 1], [], []>} : vector<2x32xf32>, vector<32x16xf32>, vector<2x16xf32> -> vector<2x16xf32>
    %171 = vector.broadcast %3 : vector<1x16xf32> to vector<2x16xf32>
    %172 = arith.addf %170, %171 : vector<2x16xf32>
    %173 = vector.broadcast %165 : f32 to vector<2x16xf32>
    %174 = arith.mulf %173, %172 : vector<2x16xf32>
    %175 = arith.addf %154, %174 : vector<2x16xf32>
    %c8_i32 = arith.constant 8 : i32
    return
  }
}

</mosaic_0001>

<llo_original>
// kernel: tpu_custom_call.1
$region0: #{tpu_custom_call.1}
  #allocation0 [shape = 'u32[]', space=smem, size = 0x4, offset = 0x4, fixed_abs, tag = 'smem constant byte address 0x4 - core index']
  #allocation1 [shape = 'u32[144,128]{1,0:T(1,128)}', space=vmem, size = 0x12000, scoped, tag = 'internal scratch']
  %s0 = inlined_call_operand.vmem [shape: f32[8], index: 0, kind: input, shape index: {}]
  %s1 = inlined_call_operand.vmem [shape: f32[2,8], index: 1, kind: input, shape index: {}]
  %s2 = inlined_call_operand.vmem [shape: f32[8,16], index: 2, kind: input, shape index: {}]
  %s3 = inlined_call_operand.vmem [shape: f32[16,32], index: 3, kind: input, shape index: {}]
  %s4 = inlined_call_operand.vmem [shape: f32[1,32], index: 4, kind: input, shape index: {}]
  %s5 = inlined_call_operand.vmem [shape: f32[32,16], index: 5, kind: input, shape index: {}]
  %s6 = inlined_call_operand.vmem [shape: f32[1,16], index: 6, kind: input, shape index: {}]
  %s7 = inlined_call_operand.vmem [shape: f32[16,4], index: 7, kind: input, shape index: {}]
  %s8 = inlined_call_operand.hbm [shape: f32[8,2,16], index: 8, kind: output, shape index: {0}]
  %s9 = inlined_call_operand.vmem [shape: f32[8,2,4], index: 9, kind: output, shape index: {1}]
  %10 = xla_tuple %s8, %s9
  %s11 = sld [smem:[#allocation0]]
  $region54: #{tpu_custom_call.1} parent=0
    _
  %s13 = ssub.s32 1, %s11
  %s14 = scalar_select 0, %s13, %s11
  $region1: #{tpu_custom_call.1} parent=0
    #allocation2 [shape = 'u8[512]{0}', space=smem, size = 0x200, scoped, tag = 'input window, operand 0, single buffered']
    #allocation3 [shape = 's32[1]{0}', space=sflag, size = 0x4, scoped, tag = 'scoped memory for tpu_custom_call.1']
    #allocation4 [shape = 's32[1]{0}', space=sflag, size = 0x4, scoped, tag = 'scoped memory for tpu_custom_call.1']
    #allocation5 [shape = 'u8[8192]{0}', space=vmem, size = 0x2000, scoped, tag = 'output window, operand 0, single buffered']
    %15 = vsyncpa [#allocation4], 0
    %16 = vsyncpa [#allocation3], 0
    // Predicated region
    $region2: #{tpu_custom_call.1} parent=1 // pred_check
      _
    $region3: #{tpu_custom_call.1} parent=1 // pred_check_branch
      %18 = sbr.rel (0) target = $region5
    $region4: #{tpu_custom_call.1} parent=1 // pred_region
      %s20 = ssub.s32 16, 16
      %21 = vsyncadd [#allocation4], %s20
      %s23 = sshll.u32 %s0, 4
      %s24 = int_to_ptr.vmem [resolvable:$true] %s23
      %26 = dma.vmem_to_smem %s24, 16, [#allocation2], [#allocation4]
    $region5: #{tpu_custom_call.1} parent=1 // pred_fallthru
      _
    // Predicated region
    $region6: #{tpu_custom_call.1} parent=1 // pred_check
      _
    $region7: #{tpu_custom_call.1} parent=1 // pred_check_branch
      %28 = sbr.rel (0) target = $region9
    $region8: #{tpu_custom_call.1} parent=1 // pred_region
      _
    $region9: #{tpu_custom_call.1} parent=1 // pred_fallthru
      _
    // Predicated region
    $region10: #{tpu_custom_call.1} parent=1 // pred_check
      _
    $region11: #{tpu_custom_call.1} parent=1 // pred_check_branch
      %30 = sbr.rel (0) target = $region13
    $region12: #{tpu_custom_call.1} parent=1 // pred_region
      _
    $region13: #{tpu_custom_call.1} parent=1 // pred_fallthru
      _
    // Predicated region
    $region14: #{tpu_custom_call.1} parent=1 // pred_check
      _
    $region15: #{tpu_custom_call.1} parent=1 // pred_check_branch
      %32 = sbr.rel (0) target = $region17
    $region16: #{tpu_custom_call.1} parent=1 // pred_region
      _
    $region17: #{tpu_custom_call.1} parent=1 // pred_fallthru
      _
    // Predicated region
    $region18: #{tpu_custom_call.1} parent=1 // pred_check
      _
    $region19: #{tpu_custom_call.1} parent=1 // pred_check_branch
      %34 = sbr.rel (0) target = $region21
    $region20: #{tpu_custom_call.1} parent=1 // pred_region
      _
    $region21: #{tpu_custom_call.1} parent=1 // pred_fallthru
      _
    // Predicated region
    $region22: #{tpu_custom_call.1} parent=1 // pred_check
      _
    $region23: #{tpu_custom_call.1} parent=1 // pred_check_branch
      %36 = sbr.rel (0) target = $region25
    $region24: #{tpu_custom_call.1} parent=1 // pred_region
      _
    $region25: #{tpu_custom_call.1} parent=1 // pred_fallthru
      _
    // Predicated region
    $region26: #{tpu_custom_call.1} parent=1 // pred_check
      _
    $region27: #{tpu_custom_call.1} parent=1 // pred_check_branch
      %38 = sbr.rel (0) target = $region29
    $region28: #{tpu_custom_call.1} parent=1 // pred_region
      _
    $region29: #{tpu_custom_call.1} parent=1 // pred_fallthru
      _
    // Predicated region
    $region30: #{tpu_custom_call.1} parent=1 // pred_check
      _
    $region31: #{tpu_custom_call.1} parent=1 // pred_check_branch
      %40 = sbr.rel (0) target = $region33
    $region32: #{tpu_custom_call.1} parent=1 // pred_region
      _
    $region33: #{tpu_custom_call.1} parent=1 // pred_fallthru
      _
    // Predicated region
    $region34: #{tpu_custom_call.1} parent=1 // pred_check
      _
    $region35: #{tpu_custom_call.1} parent=1 // pred_check_branch
      %42 = sbr.rel (0) target = $region37
    $region36: #{tpu_custom_call.1} parent=1 // pred_region
      %43 = dma.done [#allocation4], 16
    $region37: #{tpu_custom_call.1} parent=1 // pred_fallthru
      _
    %44 = sfence
    %v45 = vld [vmem:[%s3] sm:$0xff]
    %v46 = vld [vmem:[%s3 + $0x8] sm:$0xff]
    %v47 = vld [vmem:[%s4] sm:$0x1]
    %v48 = vld [vmem:[%s5] sm:$0xff]
    %v49 = vld [vmem:[%s5 + $0x8] sm:$0xff]
    %v50 = vld [vmem:[%s5 + $0x10] sm:$0xff]
    %v51 = vld [vmem:[%s5 + $0x18] sm:$0xff]
    %v52 = vld [vmem:[%s6] sm:$0x1]
    %v53 = vld [vmem:[%s7] sm:$0xff]
    %v54 = vld [vmem:[%s7 + $0x8] sm:$0xff]
    %v55 = vld [vmem:[%s1] sm:$0x3]
    %v56 = vld [vmem:[%s2] sm:$0xff]
    %vm57 = vcmask 64512
    %v59 = vsel %vm57, %v55, 0
    %61 = vmatprep.subr.mxu0 0.0
    %62 = vmatpush1.msra.mxu0 %v56
    %63 = vmatprep.subr.mxu0 0.0
    %64 = vmatpush1.msra.mxu0 0.0
    %65 = vmatprep.subr.mxu0 0.0
    %66 = vmatpush1.msra.mxu0 0.0
    %67 = vmatprep.subr.mxu0 0.0
    %68 = vmatpush1.msra.mxu0 0.0
    %69 = vmatprep.subr.mxu0 0.0
    %70 = vmatpush1.msra.mxu0 0.0
    %71 = vmatprep.subr.mxu0 0.0
    %72 = vmatpush1.msra.mxu0 0.0
    %73 = vmatprep.subr.mxu0 0.0
    %74 = vmatpush1.msra.mxu0 0.0
    %75 = vmatprep.subr.mxu0 0.0
    %76 = vmatpush1.msra.mxu0 0.0
    %77 = vmatprep.subr.mxu0 0.0
    %78 = vmatpush1.msra.mxu0 0.0
    %79 = vmatprep.subr.mxu0 0.0
    %80 = vmatpush1.msra.mxu0 0.0
    %81 = vmatprep.subr.mxu0 0.0
    %82 = vmatpush1.msra.mxu0 0.0
    %83 = vmatprep.subr.mxu0 0.0
    %84 = vmatpush1.msra.mxu0 0.0
    %85 = vmatprep.subr.mxu0 0.0
    %86 = vmatpush1.msra.mxu0 0.0
    %87 = vmatprep.subr.mxu0 0.0
    %88 = vmatpush1.msra.mxu0 0.0
    %89 = vmatprep.subr.mxu0 0.0
    %90 = vmatpush1.msra.mxu0 0.0
    %91 = vmatprep.subr.mxu0 0.0
    %92 = vmatpush1.msra.mxu0 0.0
    %93 = vmatprep.subr.mxu0 0.0
    %94 = vmatpush1.msra.mxu0 0.0
    %95 = vmatprep.subr.mxu0 0.0
    %96 = vmatpush1.msra.mxu0 0.0
    %97 = vmatprep.subr.mxu0 0.0
    %98 = vmatpush1.msra.mxu0 0.0
    %99 = vmatprep.subr.mxu0 0.0
    %100 = vmatpush1.msra.mxu0 0.0
    %101 = vmatprep.subr.mxu0 0.0
    %102 = vmatpush1.msra.mxu0 0.0
    %103 = vmatprep.subr.mxu0 0.0
    %104 = vmatpush1.msra.mxu0 0.0
    %105 = vmatprep.subr.mxu0 0.0
    %106 = vmatpush1.msra.mxu0 0.0
    %107 = vmatprep.subr.mxu0 0.0
    %108 = vmatpush1.msra.mxu0 0.0
    %109 = vmatprep.subr.mxu0 0.0
    %110 = vmatpush1.msra.mxu0 0.0
    %111 = vmatprep.subr.mxu0 0.0
    %112 = vmatpush1.msra.mxu0 0.0
    %113 = vmatprep.subr.mxu0 0.0
    %114 = vmatpush1.msra.mxu0 0.0
    %115 = vmatprep.subr.mxu0 0.0
    %116 = vmatpush1.msra.mxu0 0.0
    %117 = vmatprep.subr.mxu0 0.0
    %118 = vmatpush1.msra.mxu0 0.0
    %119 = vmatprep.subr.mxu0 0.0
    %120 = vmatpush1.msra.mxu0 0.0
    %121 = vmatprep.subr.mxu0 0.0
    %122 = vmatpush1.msra.mxu0 0.0
    %123 = vmatprep.subr.mxu0 0.0
    %124 = vmatpush1.msra.mxu0 0.0
    %125 = vmatprep.mubr.f32.mxu0 0.0
    %126 = vmatmul.mubr.f32.gmra.mrb[0].mxu0 %v59
    %v127 = vpop.f32.mrb[0].mxu0
    %v128 = vadd.f32 0.0, %v127
    %v129 = vpop.f32.mrb[0].mxu0
    %130 = vdwg.mxu0
    %vm131 = vcmask 123904
    %132 = vst.msk [vmem:[#allocation5] sm:$0x3] %vm131, %v128
    %vm133 = vcmask 130048
    %v135 = vsel %vm133, %v128, 0
    %137 = vmatprep.subr.mxu0 0.0
    %138 = vmatpush1.msra.mxu0 %v53
    %139 = vmatprep.subr.mxu0 0.0
    %140 = vmatpush1.msra.mxu0 %v54
    %141 = vmatprep.subr.mxu0 0.0
    %142 = vmatpush1.msra.mxu0 0.0
    %143 = vmatprep.subr.mxu0 0.0
    %144 = vmatpush1.msra.mxu0 0.0
    %145 = vmatprep.subr.mxu0 0.0
    %146 = vmatpush1.msra.mxu0 0.0
    %147 = vmatprep.subr.mxu0 0.0
    %148 = vmatpush1.msra.mxu0 0.0
    %149 = vmatprep.subr.mxu0 0.0
    %150 = vmatpush1.msra.mxu0 0.0
    %151 = vmatprep.subr.mxu0 0.0
    %152 = vmatpush1.msra.mxu0 0.0
    %153 = vmatprep.subr.mxu0 0.0
    %154 = vmatpush1.msra.mxu0 0.0
    %155 = vmatprep.subr.mxu0 0.0
    %156 = vmatpush1.msra.mxu0 0.0
    %157 = vmatprep.subr.mxu0 0.0
    %158 = vmatpush1.msra.mxu0 0.0
    %159 = vmatprep.subr.mxu0 0.0
    %160 = vmatpush1.msra.mxu0 0.0
    %161 = vmatprep.subr.mxu0 0.0
    %162 = vmatpush1.msra.mxu0 0.0
    %163 = vmatprep.subr.mxu0 0.0
    %164 = vmatpush1.msra.mxu0 0.0
    %165 = vmatprep.subr.mxu0 0.0
    %166 = vmatpush1.msra.mxu0 0.0
    %167 = vmatprep.subr.mxu0 0.0
    %168 = vmatpush1.msra.mxu0 0.0
    %169 = vmatprep.subr.mxu0 0.0
    %170 = vmatpush1.msra.mxu0 0.0
    %171 = vmatprep.subr.mxu0 0.0
    %172 = vmatpush1.msra.mxu0 0.0
    %173 = vmatprep.subr.mxu0 0.0
    %174 = vmatpush1.msra.mxu0 0.0
    %175 = vmatprep.subr.mxu0 0.0
    %176 = vmatpush1.msra.mxu0 0.0
    %177 = vmatprep.subr.mxu0 0.0
    %178 = vmatpush1.msra.mxu0 0.0
    %179 = vmatprep.subr.mxu0 0.0
    %180 = vmatpush1.msra.mxu0 0.0
    %181 = vmatprep.subr.mxu0 0.0
    %182 = vmatpush1.msra.mxu0 0.0
    %183 = vmatprep.subr.mxu0 0.0
    %184 = vmatpush1.msra.mxu0 0.0
    %185 = vmatprep.subr.mxu0 0.0
    %186 = vmatpush1.msra.mxu0 0.0
    %187 = vmatprep.subr.mxu0 0.0
    %188 = vmatpush1.msra.mxu0 0.0
    %189 = vmatprep.subr.mxu0 0.0
    %190 = vmatpush1.msra.mxu0 0.0
    %191 = vmatprep.subr.mxu0 0.0
    %192 = vmatpush1.msra.mxu0 0.0
    %193 = vmatprep.subr.mxu0 0.0
    %194 = vmatpush1.msra.mxu0 0.0
    %195 = vmatprep.subr.mxu0 0.0
    %196 = vmatpush1.msra.mxu0 0.0
    %197 = vmatprep.subr.mxu0 0.0
    %198 = vmatpush1.msra.mxu0 0.0
    %199 = vmatprep.subr.mxu0 0.0
    %200 = vmatpush1.msra.mxu0 0.0
    %201 = vmatprep.mubr.f32.mxu0 0.0
    %202 = vmatmul.mubr.f32.gmra.mrb[0].mxu0 %v135
    %v203 = vpop.f32.mrb[0].mxu0
    %v204 = vadd.f32 0.0, %v203
    %v205 = vpop.f32.mrb[0].mxu0
    %206 = vdwg.mxu0
    %vm207 = vcmask 25600
    %208 = vst.msk [vmem:[%s9] sm:$0x3] %vm207, %v204
    %s209 = sld [smem:[#allocation2]]
    %v211 = vlaneseq
    %v212 = vshrl.u32 %v211, 7
    %v213 = vsub.s32 0, %v212
    %v214 = vrot.slane %v47, %v213
    %216 = vmatprep.subr.mxu0 0.0
    %217 = vmatpush1.msra.mxu0 %v45
    %218 = vmatprep.subr.mxu0 0.0
    %219 = vmatpush1.msra.mxu0 %v46
    %220 = vmatprep.subr.mxu0 0.0
    %221 = vmatpush1.msra.mxu0 0.0
    %222 = vmatprep.subr.mxu0 0.0
    %223 = vmatpush1.msra.mxu0 0.0
    %224 = vmatprep.subr.mxu0 0.0
    %225 = vmatpush1.msra.mxu0 0.0
    %226 = vmatprep.subr.mxu0 0.0
    %227 = vmatpush1.msra.mxu0 0.0
    %228 = vmatprep.subr.mxu0 0.0
    %229 = vmatpush1.msra.mxu0 0.0
    %230 = vmatprep.subr.mxu0 0.0
    %231 = vmatpush1.msra.mxu0 0.0
    %232 = vmatprep.subr.mxu0 0.0
    %233 = vmatpush1.msra.mxu0 0.0
    %234 = vmatprep.subr.mxu0 0.0
    %235 = vmatpush1.msra.mxu0 0.0
    %236 = vmatprep.subr.mxu0 0.0
    %237 = vmatpush1.msra.mxu0 0.0
    %238 = vmatprep.subr.mxu0 0.0
    %239 = vmatpush1.msra.mxu0 0.0
    %240 = vmatprep.subr.mxu0 0.0
    %241 = vmatpush1.msra.mxu0 0.0
    %242 = vmatprep.subr.mxu0 0.0
    %243 = vmatpush1.msra.mxu0 0.0
    %244 = vmatprep.subr.mxu0 0.0
    %245 = vmatpush1.msra.mxu0 0.0
    %246 = vmatprep.subr.mxu0 0.0
    %247 = vmatpush1.msra.mxu0 0.0
    %248 = vmatprep.subr.mxu0 0.0
    %249 = vmatpush1.msra.mxu0 0.0
    %250 = vmatprep.subr.mxu0 0.0
    %251 = vmatpush1.msra.mxu0 0.0
    %252 = vmatprep.subr.mxu0 0.0
    %253 = vmatpush1.msra.mxu0 0.0
    %254 = vmatprep.subr.mxu0 0.0
    %255 = vmatpush1.msra.mxu0 0.0
    %256 = vmatprep.subr.mxu0 0.0
    %257 = vmatpush1.msra.mxu0 0.0
    %258 = vmatprep.subr.mxu0 0.0
    %259 = vmatpush1.msra.mxu0 0.0
    %260 = vmatprep.subr.mxu0 0.0
    %261 = vmatpush1.msra.mxu0 0.0
    %262 = vmatprep.subr.mxu0 0.0
    %263 = vmatpush1.msra.mxu0 0.0
    %264 = vmatprep.subr.mxu0 0.0
    %265 = vmatpush1.msra.mxu0 0.0
    %266 = vmatprep.subr.mxu0 0.0
    %267 = vmatpush1.msra.mxu0 0.0
    %268 = vmatprep.subr.mxu0 0.0
    %269 = vmatpush1.msra.mxu0 0.0
    %270 = vmatprep.subr.mxu0 0.0
    %271 = vmatpush1.msra.mxu0 0.0
    %272 = vmatprep.subr.mxu0 0.0
    %273 = vmatpush1.msra.mxu0 0.0
    %274 = vmatprep.subr.mxu0 0.0
    %275 = vmatpush1.msra.mxu0 0.0
    %276 = vmatprep.subr.mxu0 0.0
    %277 = vmatpush1.msra.mxu0 0.0
    %278 = vmatprep.subr.mxu0 0.0
    %279 = vmatpush1.msra.mxu0 0.0
    %280 = vmatprep.mubr.f32.mxu0 0.0
    %281 = vmatmul.mubr.f32.gmra.mrb[0].mxu0 %v135
    %v282 = vpop.f32.mrb[0].mxu0
    %v283 = vadd.f32 %v214, %v282
    %v284 = vpop.f32.mrb[0].mxu0
    %285 = vdwg.mxu0
    %v286 = vtanh.pop %v283
    %v288 = vlaneseq
    %v289 = vshrl.u32 %v288, 7
    %v290 = vsub.s32 0, %v289
    %v291 = vrot.slane %v52, %v290
    %vm293 = vcmask 261120
    %v295 = vsel %vm293, %v286, 0
    %297 = vmatprep.subr.mxu0 0.0
    %298 = vmatpush1.msra.mxu0 %v48
    %299 = vmatprep.subr.mxu0 0.0
    %300 = vmatpush1.msra.mxu0 %v49
    %301 = vmatprep.subr.mxu0 0.0
    %302 = vmatpush1.msra.mxu0 %v50
    %303 = vmatprep.subr.mxu0 0.0
    %304 = vmatpush1.msra.mxu0 %v51
    %305 = vmatprep.subr.mxu0 0.0
    %306 = vmatpush1.msra.mxu0 0.0
    %307 = vmatprep.subr.mxu0 0.0
    %308 = vmatpush1.msra.mxu0 0.0
    %309 = vmatprep.subr.mxu0 0.0
    %310 = vmatpush1.msra.mxu0 0.0
    %311 = vmatprep.subr.mxu0 0.0
    %312 = vmatpush1.msra.mxu0 0.0
    %313 = vmatprep.subr.mxu0 0.0
    %314 = vmatpush1.msra.mxu0 0.0
    %315 = vmatprep.subr.mxu0 0.0
    %316 = vmatpush1.msra.mxu0 0.0
    %317 = vmatprep.subr.mxu0 0.0
    %318 = vmatpush1.msra.mxu0 0.0
    %319 = vmatprep.subr.mxu0 0.0
    %320 = vmatpush1.msra.mxu0 0.0
    %321 = vmatprep.subr.mxu0 0.0
    %322 = vmatpush1.msra.mxu0 0.0
    %323 = vmatprep.subr.mxu0 0.0
    %324 = vmatpush1.msra.mxu0 0.0
    %325 = vmatprep.subr.mxu0 0.0
    %326 = vmatpush1.msra.mxu0 0.0
    %327 = vmatprep.subr.mxu0 0.0
    %328 = vmatpush1.msra.mxu0 0.0
    %329 = vmatprep.subr.mxu0 0.0
    %330 = vmatpush1.msra.mxu0 0.0
    %331 = vmatprep.subr.mxu0 0.0
    %332 = vmatpush1.msra.mxu0 0.0
    %333 = vmatprep.subr.mxu0 0.0
    %334 = vmatpush1.msra.mxu0 0.0
    %335 = vmatprep.subr.mxu0 0.0
    %336 = vmatpush1.msra.mxu0 0.0
    %337 = vmatprep.subr.mxu0 0.0
    %338 = vmatpush1.msra.mxu0 0.0
    %339 = vmatprep.subr.mxu0 0.0
    %340 = vmatpush1.msra.mxu0 0.0
    %341 = vmatprep.subr.mxu0 0.0
    %342 = vmatpush1.msra.mxu0 0.0
    %343 = vmatprep.subr.mxu0 0.0
    %344 = vmatpush1.msra.mxu0 0.0
    %345 = vmatprep.subr.mxu0 0.0
    %346 = vmatpush1.msra.mxu0 0.0
    %347 = vmatprep.subr.mxu0 0.0
    %348 = vmatpush1.msra.mxu0 0.0
    %349 = vmatprep.subr.mxu0 0.0
    %350 = vmatpush1.msra.mxu0 0.0
    %351 = vmatprep.subr.mxu0 0.0
    %352 = vmatpush1.msra.mxu0 0.0
    %353 = vmatprep.subr.mxu0 0.0
    %354 = vmatpush1.msra.mxu0 0.0
    %355 = vmatprep.subr.mxu0 0.0
    %356 = vmatpush1.msra.mxu0 0.0
    %357 = vmatprep.subr.mxu0 0.0
    %358 = vmatpush1.msra.mxu0 0.0
    %359 = vmatprep.subr.mxu0 0.0
    %360 = vmatpush1.msra.mxu0 0.0
    %361 = vmatprep.mubr.f32.mxu0 0.0
    %362 = vmatmul.mubr.f32.gmra.mrb[0].mxu0 %v295
    %v363 = vpop.f32.mrb[0].mxu0
    %v364 = vadd.f32 %v291, %v363
    %v365 = vpop.f32.mrb[0].mxu0
    %366 = vdwg.mxu0
    %v367 = vstv %s209
    %v368 = vmul.f32 %v367, %v364
    %v369 = vadd.f32 %v128, %v368
    %s370 = scalar_lea.vmem [#allocation5], 2
    %371 = vst.msk [vmem:[%s370] sm:$0x3] %vm131, %v369
    %v373 = vsel %vm133, %v369, 0
    %375 = vmatprep.subr.mxu0 0.0
    %376 = vmatpush1.msra.mxu0 %v53
    %377 = vmatprep.subr.mxu0 0.0
    %378 = vmatpush1.msra.mxu0 %v54
    %379 = vmatprep.subr.mxu0 0.0
    %380 = vmatpush1.msra.mxu0 0.0
    %381 = vmatprep.subr.mxu0 0.0
    %382 = vmatpush1.msra.mxu0 0.0
    %383 = vmatprep.subr.mxu0 0.0
    %384 = vmatpush1.msra.mxu0 0.0
    %385 = vmatprep.subr.mxu0 0.0
    %386 = vmatpush1.msra.mxu0 0.0
    %387 = vmatprep.subr.mxu0 0.0
    %388 = vmatpush1.msra.mxu0 0.0
    %389 = vmatprep.subr.mxu0 0.0
    %390 = vmatpush1.msra.mxu0 0.0
    %391 = vmatprep.subr.mxu0 0.0
    %392 = vmatpush1.msra.mxu0 0.0
    %393 = vmatprep.subr.mxu0 0.0
    %394 = vmatpush1.msra.mxu0 0.0
    %395 = vmatprep.subr.mxu0 0.0
    %396 = vmatpush1.msra.mxu0 0.0
    %397 = vmatprep.subr.mxu0 0.0
    %398 = vmatpush1.msra.mxu0 0.0
    %399 = vmatprep.subr.mxu0 0.0
    %400 = vmatpush1.msra.mxu0 0.0
    %401 = vmatprep.subr.mxu0 0.0
    %402 = vmatpush1.msra.mxu0 0.0
    %403 = vmatprep.subr.mxu0 0.0
    %404 = vmatpush1.msra.mxu0 0.0
    %405 = vmatprep.subr.mxu0 0.0
    %406 = vmatpush1.msra.mxu0 0.0
    %407 = vmatprep.subr.mxu0 0.0
    %408 = vmatpush1.msra.mxu0 0.0
    %409 = vmatprep.subr.mxu0 0.0
    %410 = vmatpush1.msra.mxu0 0.0
    %411 = vmatprep.subr.mxu0 0.0
    %412 = vmatpush1.msra.mxu0 0.0
    %413 = vmatprep.subr.mxu0 0.0
    %414 = vmatpush1.msra.mxu0 0.0
    %415 = vmatprep.subr.mxu0 0.0
    %416 = vmatpush1.msra.mxu0 0.0
    %417 = vmatprep.subr.mxu0 0.0
    %418 = vmatpush1.msra.mxu0 0.0
    %419 = vmatprep.subr.mxu0 0.0
    %420 = vmatpush1.msra.mxu0 0.0
    %421 = vmatprep.subr.mxu0 0.0
    %422 = vmatpush1.msra.mxu0 0.0
    %423 = vmatprep.subr.mxu0 0.0
    %424 = vmatpush1.msra.mxu0 0.0
    %425 = vmatprep.subr.mxu0 0.0
    %426 = vmatpush1.msra.mxu0 0.0
    %427 = vmatprep.subr.mxu0 0.0
    %428 = vmatpush1.msra.mxu0 0.0
    %429 = vmatprep.subr.mxu0 0.0
    %430 = vmatpush1.msra.mxu0 0.0
    %431 = vmatprep.subr.mxu0 0.0
    %432 = vmatpush1.msra.mxu0 0.0
    %433 = vmatprep.subr.mxu0 0.0
    %434 = vmatpush1.msra.mxu0 0.0
    %435 = vmatprep.subr.mxu0 0.0
    %436 = vmatpush1.msra.mxu0 0.0
    %437 = vmatprep.subr.mxu0 0.0
    %438 = vmatpush1.msra.mxu0 0.0
    %439 = vmatprep.mubr.f32.mxu0 0.0
    %440 = vmatmul.mubr.f32.gmra.mrb[0].mxu0 %v373
    %v441 = vpop.f32.mrb[0].mxu0
    %v442 = vadd.f32 0.0, %v441
    %v443 = vpop.f32.mrb[0].mxu0
    %444 = vdwg.mxu0
    %s445 = scalar_lea.vmem %s9, 2
    %446 = vst.msk [vmem:[%s445] sm:$0x3] %vm207, %v442
    %s447 = sld [smem:[#allocation2 + $0x1]]
    %448 = vmatprep.subr.mxu0 0.0
    %449 = vmatpush1.msra.mxu0 %v45
    %450 = vmatprep.subr.mxu0 0.0
    %451 = vmatpush1.msra.mxu0 %v46
    %452 = vmatprep.subr.mxu0 0.0
    %453 = vmatpush1.msra.mxu0 0.0
    %454 = vmatprep.subr.mxu0 0.0
    %455 = vmatpush1.msra.mxu0 0.0
    %456 = vmatprep.subr.mxu0 0.0
    %457 = vmatpush1.msra.mxu0 0.0
    %458 = vmatprep.subr.mxu0 0.0
    %459 = vmatpush1.msra.mxu0 0.0
    %460 = vmatprep.subr.mxu0 0.0
    %461 = vmatpush1.msra.mxu0 0.0
    %462 = vmatprep.subr.mxu0 0.0
    %463 = vmatpush1.msra.mxu0 0.0
    %464 = vmatprep.subr.mxu0 0.0
    %465 = vmatpush1.msra.mxu0 0.0
    %466 = vmatprep.subr.mxu0 0.0
    %467 = vmatpush1.msra.mxu0 0.0
    %468 = vmatprep.subr.mxu0 0.0
    %469 = vmatpush1.msra.mxu0 0.0
    %470 = vmatprep.subr.mxu0 0.0
    %471 = vmatpush1.msra.mxu0 0.0
    %472 = vmatprep.subr.mxu0 0.0
    %473 = vmatpush1.msra.mxu0 0.0
    %474 = vmatprep.subr.mxu0 0.0
    %475 = vmatpush1.msra.mxu0 0.0
    %476 = vmatprep.subr.mxu0 0.0
    %477 = vmatpush1.msra.mxu0 0.0
    %478 = vmatprep.subr.mxu0 0.0
    %479 = vmatpush1.msra.mxu0 0.0
    %480 = vmatprep.subr.mxu0 0.0
    %481 = vmatpush1.msra.mxu0 0.0
    %482 = vmatprep.subr.mxu0 0.0
    %483 = vmatpush1.msra.mxu0 0.0
    %484 = vmatprep.subr.mxu0 0.0
    %485 = vmatpush1.msra.mxu0 0.0
    %486 = vmatprep.subr.mxu0 0.0
    %487 = vmatpush1.msra.mxu0 0.0
    %488 = vmatprep.subr.mxu0 0.0
    %489 = vmatpush1.msra.mxu0 0.0
    %490 = vmatprep.subr.mxu0 0.0
    %491 = vmatpush1.msra.mxu0 0.0
    %492 = vmatprep.subr.mxu0 0.0
    %493 = vmatpush1.msra.mxu0 0.0
    %494 = vmatprep.subr.mxu0 0.0
    %495 = vmatpush1.msra.mxu0 0.0
    %496 = vmatprep.subr.mxu0 0.0
    %497 = vmatpush1.msra.mxu0 0.0
    %498 = vmatprep.subr.mxu0 0.0
    %499 = vmatpush1.msra.mxu0 0.0
    %500 = vmatprep.subr.mxu0 0.0
    %501 = vmatpush1.msra.mxu0 0.0
    %502 = vmatprep.subr.mxu0 0.0
    %503 = vmatpush1.msra.mxu0 0.0
    %504 = vmatprep.subr.mxu0 0.0
    %505 = vmatpush1.msra.mxu0 0.0
    %506 = vmatprep.subr.mxu0 0.0
    %507 = vmatpush1.msra.mxu0 0.0
    %508 = vmatprep.subr.mxu0 0.0
    %509 = vmatpush1.msra.mxu0 0.0
    %510 = vmatprep.subr.mxu0 0.0
    %511 = vmatpush1.msra.mxu0 0.0
    %512 = vmatprep.mubr.f32.mxu0 0.0
    %513 = vmatmul.mubr.f32.gmra.mrb[0].mxu0 %v373
    %v514 = vpop.f32.mrb[0].mxu0
    %v515 = vadd.f32 %v214, %v514
    %v516 = vpop.f32.mrb[0].mxu0
    %517 = vdwg.mxu0
    %v518 = vtanh.pop %v515
    %v520 = vsel %vm293, %v518, 0
    %522 = vmatprep.subr.mxu0 0.0
    %523 = vmatpush1.msra.mxu0 %v48
    %524 = vmatprep.subr.mxu0 0.0
    %525 = vmatpush1.msra.mxu0 %v49
    %526 = vmatprep.subr.mxu0 0.0
    %527 = vmatpush1.msra.mxu0 %v50
    %528 = vmatprep.subr.mxu0 0.0
    %529 = vmatpush1.msra.mxu0 %v51
    %530 = vmatprep.subr.mxu0 0.0
    %531 = vmatpush1.msra.mxu0 0.0
    %532 = vmatprep.subr.mxu0 0.0
    %533 = vmatpush1.msra.mxu0 0.0
    %534 = vmatprep.subr.mxu0 0.0
    %535 = vmatpush1.msra.mxu0 0.0
    %536 = vmatprep.subr.mxu0 0.0
    %537 = vmatpush1.msra.mxu0 0.0
    %538 = vmatprep.subr.mxu0 0.0
    %539 = vmatpush1.msra.mxu0 0.0
    %540 = vmatprep.subr.mxu0 0.0
    %541 = vmatpush1.msra.mxu0 0.0
    %542 = vmatprep.subr.mxu0 0.0
    %543 = vmatpush1.msra.mxu0 0.0
    %544 = vmatprep.subr.mxu0 0.0
    %545 = vmatpush1.msra.mxu0 0.0
    %546 = vmatprep.subr.mxu0 0.0
    %547 = vmatpush1.msra.mxu0 0.0
    %548 = vmatprep.subr.mxu0 0.0
    %549 = vmatpush1.msra.mxu0 0.0
    %550 = vmatprep.subr.mxu0 0.0
    %551 = vmatpush1.msra.mxu0 0.0
    %552 = vmatprep.subr.mxu0 0.0
    %553 = vmatpush1.msra.mxu0 0.0
    %554 = vmatprep.subr.mxu0 0.0
    %555 = vmatpush1.msra.mxu0 0.0
    %556 = vmatprep.subr.mxu0 0.0
    %557 = vmatpush1.msra.mxu0 0.0
    %558 = vmatprep.subr.mxu0 0.0
    %559 = vmatpush1.msra.mxu0 0.0
    %560 = vmatprep.subr.mxu0 0.0
    %561 = vmatpush1.msra.mxu0 0.0
    %562 = vmatprep.subr.mxu0 0.0
    %563 = vmatpush1.msra.mxu0 0.0
    %564 = vmatprep.subr.mxu0 0.0
    %565 = vmatpush1.msra.mxu0 0.0
    %566 = vmatprep.subr.mxu0 0.0
    %567 = vmatpush1.msra.mxu0 0.0
    %568 = vmatprep.subr.mxu0 0.0
    %569 = vmatpush1.msra.mxu0 0.0
    %570 = vmatprep.subr.mxu0 0.0
    %571 = vmatpush1.msra.mxu0 0.0
    %572 = vmatprep.subr.mxu0 0.0
    %573 = vmatpush1.msra.mxu0 0.0
    %574 = vmatprep.subr.mxu0 0.0
    %575 = vmatpush1.msra.mxu0 0.0
    %576 = vmatprep.subr.mxu0 0.0
    %577 = vmatpush1.msra.mxu0 0.0
    %578 = vmatprep.subr.mxu0 0.0
    %579 = vmatpush1.msra.mxu0 0.0
    %580 = vmatprep.subr.mxu0 0.0
    %581 = vmatpush1.msra.mxu0 0.0
    %582 = vmatprep.subr.mxu0 0.0
    %583 = vmatpush1.msra.mxu0 0.0
    %584 = vmatprep.subr.mxu0 0.0
    %585 = vmatpush1.msra.mxu0 0.0
    %586 = vmatprep.mubr.f32.mxu0 0.0
    %587 = vmatmul.mubr.f32.gmra.mrb[0].mxu0 %v520
    %v588 = vpop.f32.mrb[0].mxu0
    %v589 = vadd.f32 %v291, %v588
    %v590 = vpop.f32.mrb[0].mxu0
    %591 = vdwg.mxu0
    %v592 = vstv %s447
    %v593 = vmul.f32 %v592, %v589
    %v594 = vadd.f32 %v369, %v593
    %s595 = scalar_lea.vmem [#allocation5], 4
    %596 = vst.msk [vmem:[%s595] sm:$0x3] %vm131, %v594
    %v598 = vsel %vm133, %v594, 0
    %600 = vmatprep.subr.mxu0 0.0
    %601 = vmatpush1.msra.mxu0 %v53
    %602 = vmatprep.subr.mxu0 0.0
    %603 = vmatpush1.msra.mxu0 %v54
    %604 = vmatprep.subr.mxu0 0.0
    %605 = vmatpush1.msra.mxu0 0.0
    %606 = vmatprep.subr.mxu0 0.0
    %607 = vmatpush1.msra.mxu0 0.0
    %608 = vmatprep.subr.mxu0 0.0
    %609 = vmatpush1.msra.mxu0 0.0
    %610 = vmatprep.subr.mxu0 0.0
    %611 = vmatpush1.msra.mxu0 0.0
    %612 = vmatprep.subr.mxu0 0.0
    %613 = vmatpush1.msra.mxu0 0.0
    %614 = vmatprep.subr.mxu0 0.0
    %615 = vmatpush1.msra.mxu0 0.0
    %616 = vmatprep.subr.mxu0 0.0
    %617 = vmatpush1.msra.mxu0 0.0
    %618 = vmatprep.subr.mxu0 0.0
    %619 = vmatpush1.msra.mxu0 0.0
    %620 = vmatprep.subr.mxu0 0.0
    %621 = vmatpush1.msra.mxu0 0.0
    %622 = vmatprep.subr.mxu0 0.0
    %623 = vmatpush1.msra.mxu0 0.0
    %624 = vmatprep.subr.mxu0 0.0
    %625 = vmatpush1.msra.mxu0 0.0
    %626 = vmatprep.subr.mxu0 0.0
    %627 = vmatpush1.msra.mxu0 0.0
    %628 = vmatprep.subr.mxu0 0.0
    %629 = vmatpush1.msra.mxu0 0.0
    %630 = vmatprep.subr.mxu0 0.0
    %631 = vmatpush1.msra.mxu0 0.0
    %632 = vmatprep.subr.mxu0 0.0
    %633 = vmatpush1.msra.mxu0 0.0
    %634 = vmatprep.subr.mxu0 0.0
    %635 = vmatpush1.msra.mxu0 0.0
    %636 = vmatprep.subr.mxu0 0.0
    %637 = vmatpush1.msra.mxu0 0.0
    %638 = vmatprep.subr.mxu0 0.0
    %639 = vmatpush1.msra.mxu0 0.0
    %640 = vmatprep.subr.mxu0 0.0
    %641 = vmatpush1.msra.mxu0 0.0
    %642 = vmatprep.subr.mxu0 0.0
    %643 = vmatpush1.msra.mxu0 0.0
    %644 = vmatprep.subr.mxu0 0.0
    %645 = vmatpush1.msra.mxu0 0.0
    %646 = vmatprep.subr.mxu0 0.0
    %647 = vmatpush1.msra.mxu0 0.0
    %648 = vmatprep.subr.mxu0 0.0
    %649 = vmatpush1.msra.mxu0 0.0
    %650 = vmatprep.subr.mxu0 0.0
    %651 = vmatpush1.msra.mxu0 0.0
    %652 = vmatprep.subr.mxu0 0.0
    %653 = vmatpush1.msra.mxu0 0.0
    %654 = vmatprep.subr.mxu0 0.0
    %655 = vmatpush1.msra.mxu0 0.0
    %656 = vmatprep.subr.mxu0 0.0
    %657 = vmatpush1.msra.mxu0 0.0
    %658 = vmatprep.subr.mxu0 0.0
    %659 = vmatpush1.msra.mxu0 0.0
    %660 = vmatprep.subr.mxu0 0.0
    %661 = vmatpush1.msra.mxu0 0.0
    %662 = vmatprep.subr.mxu0 0.0
    %663 = vmatpush1.msra.mxu0 0.0
    %664 = vmatprep.mubr.f32.mxu0 0.0
    %665 = vmatmul.mubr.f32.gmra.mrb[0].mxu0 %v598
    %v666 = vpop.f32.mrb[0].mxu0
    %v667 = vadd.f32 0.0, %v666
    %v668 = vpop.f32.mrb[0].mxu0
    %669 = vdwg.mxu0
    %s670 = scalar_lea.vmem %s9, 4
    %671 = vst.msk [vmem:[%s670] sm:$0x3] %vm207, %v667
    %s672 = sld [smem:[#allocation2 + $0x2]]
    %673 = vmatprep.subr.mxu0 0.0
    %674 = vmatpush1.msra.mxu0 %v45
    %675 = vmatprep.subr.mxu0 0.0
    %676 = vmatpush1.msra.mxu0 %v46
    %677 = vmatprep.subr.mxu0 0.0
    %678 = vmatpush1.msra.mxu0 0.0
    %679 = vmatprep.subr.mxu0 0.0
    %680 = vmatpush1.msra.mxu0 0.0
    %681 = vmatprep.subr.mxu0 0.0
    %682 = vmatpush1.msra.mxu0 0.0
    %683 = vmatprep.subr.mxu0 0.0
    %684 = vmatpush1.msra.mxu0 0.0
    %685 = vmatprep.subr.mxu0 0.0
    %686 = vmatpush1.msra.mxu0 0.0
    %687 = vmatprep.subr.mxu0 0.0
    %688 = vmatpush1.msra.mxu0 0.0
    %689 = vmatprep.subr.mxu0 0.0
    %690 = vmatpush1.msra.mxu0 0.0
    %691 = vmatprep.subr.mxu0 0.0
    %692 = vmatpush1.msra.mxu0 0.0
    %693 = vmatprep.subr.mxu0 0.0
    %694 = vmatpush1.msra.mxu0 0.0
    %695 = vmatprep.subr.mxu0 0.0
    %696 = vmatpush1.msra.mxu0 0.0
    %697 = vmatprep.subr.mxu0 0.0
    %698 = vmatpush1.msra.mxu0 0.0
    %699 = vmatprep.subr.mxu0 0.0
    %700 = vmatpush1.msra.mxu0 0.0
    %701 = vmatprep.subr.mxu0 0.0
    %702 = vmatpush1.msra.mxu0 0.0
    %703 = vmatprep.subr.mxu0 0.0
    %704 = vmatpush1.msra.mxu0 0.0
    %705 = vmatprep.subr.mxu0 0.0
    %706 = vmatpush1.msra.mxu0 0.0
    %707 = vmatprep.subr.mxu0 0.0
    %708 = vmatpush1.msra.mxu0 0.0
    %709 = vmatprep.subr.mxu0 0.0
    %710 = vmatpush1.msra.mxu0 0.0
    %711 = vmatprep.subr.mxu0 0.0
    %712 = vmatpush1.msra.mxu0 0.0
    %713 = vmatprep.subr.mxu0 0.0
    %714 = vmatpush1.msra.mxu0 0.0
    %715 = vmatprep.subr.mxu0 0.0
    %716 = vmatpush1.msra.mxu0 0.0
    %717 = vmatprep.subr.mxu0 0.0
    %718 = vmatpush1.msra.mxu0 0.0
    %719 = vmatprep.subr.mxu0 0.0
    %720 = vmatpush1.msra.mxu0 0.0
    %721 = vmatprep.subr.mxu0 0.0
    %722 = vmatpush1.msra.mxu0 0.0
    %723 = vmatprep.subr.mxu0 0.0
    %724 = vmatpush1.msra.mxu0 0.0
    %725 = vmatprep.subr.mxu0 0.0
    %726 = vmatpush1.msra.mxu0 0.0
    %727 = vmatprep.subr.mxu0 0.0
    %728 = vmatpush1.msra.mxu0 0.0
    %729 = vmatprep.subr.mxu0 0.0
    %730 = vmatpush1.msra.mxu0 0.0
    %731 = vmatprep.subr.mxu0 0.0
    %732 = vmatpush1.msra.mxu0 0.0
    %733 = vmatprep.subr.mxu0 0.0
    %734 = vmatpush1.msra.mxu0 0.0
    %735 = vmatprep.subr.mxu0 0.0
    %736 = vmatpush1.msra.mxu0 0.0
    %737 = vmatprep.mubr.f32.mxu0 0.0
    %738 = vmatmul.mubr.f32.gmra.mrb[0].mxu0 %v598
    %v739 = vpop.f32.mrb[0].mxu0
    %v740 = vadd.f32 %v214, %v739
    %v741 = vpop.f32.mrb[0].mxu0
    %742 = vdwg.mxu0
    %v743 = vtanh.pop %v740
    %v745 = vsel %vm293, %v743, 0
    %747 = vmatprep.subr.mxu0 0.0
    %748 = vmatpush1.msra.mxu0 %v48
    %749 = vmatprep.subr.mxu0 0.0
    %750 = vmatpush1.msra.mxu0 %v49
    %751 = vmatprep.subr.mxu0 0.0
    %752 = vmatpush1.msra.mxu0 %v50
    %753 = vmatprep.subr.mxu0 0.0
    %754 = vmatpush1.msra.mxu0 %v51
    %755 = vmatprep.subr.mxu0 0.0
    %756 = vmatpush1.msra.mxu0 0.0
    %757 = vmatprep.subr.mxu0 0.0
    %758 = vmatpush1.msra.mxu0 0.0
    %759 = vmatprep.subr.mxu0 0.0
    %760 = vmatpush1.msra.mxu0 0.0
    %761 = vmatprep.subr.mxu0 0.0
    %762 = vmatpush1.msra.mxu0 0.0
    %763 = vmatprep.subr.mxu0 0.0
    %764 = vmatpush1.msra.mxu0 0.0
    %765 = vmatprep.subr.mxu0 0.0
    %766 = vmatpush1.msra.mxu0 0.0
    %767 = vmatprep.subr.mxu0 0.0
    %768 = vmatpush1.msra.mxu0 0.0
    %769 = vmatprep.subr.mxu0 0.0
    %770 = vmatpush1.msra.mxu0 0.0
    %771 = vmatprep.subr.mxu0 0.0
    %772 = vmatpush1.msra.mxu0 0.0
    %773 = vmatprep.subr.mxu0 0.0
    %774 = vmatpush1.msra.mxu0 0.0
    %775 = vmatprep.subr.mxu0 0.0
    %776 = vmatpush1.msra.mxu0 0.0
    %777 = vmatprep.subr.mxu0 0.0
    %778 = vmatpush1.msra.mxu0 0.0
    %779 = vmatprep.subr.mxu0 0.0
    %780 = vmatpush1.msra.mxu0 0.0
    %781 = vmatprep.subr.mxu0 0.0
    %782 = vmatpush1.msra.mxu0 0.0
    %783 = vmatprep.subr.mxu0 0.0
    %784 = vmatpush1.msra.mxu0 0.0
    %785 = vmatprep.subr.mxu0 0.0
    %786 = vmatpush1.msra.mxu0 0.0
    %787 = vmatprep.subr.mxu0 0.0
    %788 = vmatpush1.msra.mxu0 0.0
    %789 = vmatprep.subr.mxu0 0.0
    %790 = vmatpush1.msra.mxu0 0.0
    %791 = vmatprep.subr.mxu0 0.0
    %792 = vmatpush1.msra.mxu0 0.0
    %793 = vmatprep.subr.mxu0 0.0
    %794 = vmatpush1.msra.mxu0 0.0
    %795 = vmatprep.subr.mxu0 0.0
    %796 = vmatpush1.msra.mxu0 0.0
    %797 = vmatprep.subr.mxu0 0.0
    %798 = vmatpush1.msra.mxu0 0.0
    %799 = vmatprep.subr.mxu0 0.0
    %800 = vmatpush1.msra.mxu0 0.0
    %801 = vmatprep.subr.mxu0 0.0
    %802 = vmatpush1.msra.mxu0 0.0
    %803 = vmatprep.subr.mxu0 0.0
    %804 = vmatpush1.msra.mxu0 0.0
    %805 = vmatprep.subr.mxu0 0.0
    %806 = vmatpush1.msra.mxu0 0.0
    %807 = vmatprep.subr.mxu0 0.0
    %808 = vmatpush1.msra.mxu0 0.0
    %809 = vmatprep.subr.mxu0 0.0
    %810 = vmatpush1.msra.mxu0 0.0
    %811 = vmatprep.mubr.f32.mxu0 0.0
    %812 = vmatmul.mubr.f32.gmra.mrb[0].mxu0 %v745
    %v813 = vpop.f32.mrb[0].mxu0
    %v814 = vadd.f32 %v291, %v813
    %v815 = vpop.f32.mrb[0].mxu0
    %816 = vdwg.mxu0
    %v817 = vstv %s672
    %v818 = vmul.f32 %v817, %v814
    %v819 = vadd.f32 %v594, %v818
    %s820 = scalar_lea.vmem [#allocation5], 6
    %821 = vst.msk [vmem:[%s820] sm:$0x3] %vm131, %v819
    %v823 = vsel %vm133, %v819, 0
    %825 = vmatprep.subr.mxu0 0.0
    %826 = vmatpush1.msra.mxu0 %v53
    %827 = vmatprep.subr.mxu0 0.0
    %828 = vmatpush1.msra.mxu0 %v54
    %829 = vmatprep.subr.mxu0 0.0
    %830 = vmatpush1.msra.mxu0 0.0
    %831 = vmatprep.subr.mxu0 0.0
    %832 = vmatpush1.msra.mxu0 0.0
    %833 = vmatprep.subr.mxu0 0.0
    %834 = vmatpush1.msra.mxu0 0.0
    %835 = vmatprep.subr.mxu0 0.0
    %836 = vmatpush1.msra.mxu0 0.0
    %837 = vmatprep.subr.mxu0 0.0
    %838 = vmatpush1.msra.mxu0 0.0
    %839 = vmatprep.subr.mxu0 0.0
    %840 = vmatpush1.msra.mxu0 0.0
    %841 = vmatprep.subr.mxu0 0.0
    %842 = vmatpush1.msra.mxu0 0.0
    %843 = vmatprep.subr.mxu0 0.0
    %844 = vmatpush1.msra.mxu0 0.0
    %845 = vmatprep.subr.mxu0 0.0
    %846 = vmatpush1.msra.mxu0 0.0
    %847 = vmatprep.subr.mxu0 0.0
    %848 = vmatpush1.msra.mxu0 0.0
    %849 = vmatprep.subr.mxu0 0.0
    %850 = vmatpush1.msra.mxu0 0.0
    %851 = vmatprep.subr.mxu0 0.0
    %852 = vmatpush1.msra.mxu0 0.0
    %853 = vmatprep.subr.mxu0 0.0
    %854 = vmatpush1.msra.mxu0 0.0
    %855 = vmatprep.subr.mxu0 0.0
    %856 = vmatpush1.msra.mxu0 0.0
    %857 = vmatprep.subr.mxu0 0.0
    %858 = vmatpush1.msra.mxu0 0.0
    %859 = vmatprep.subr.mxu0 0.0
    %860 = vmatpush1.msra.mxu0 0.0
    %861 = vmatprep.subr.mxu0 0.0
    %862 = vmatpush1.msra.mxu0 0.0
    %863 = vmatprep.subr.mxu0 0.0
    %864 = vmatpush1.msra.mxu0 0.0
    %865 = vmatprep.subr.mxu0 0.0
    %866 = vmatpush1.msra.mxu0 0.0
    %867 = vmatprep.subr.mxu0 0.0
    %868 = vmatpush1.msra.mxu0 0.0
    %869 = vmatprep.subr.mxu0 0.0
    %870 = vmatpush1.msra.mxu0 0.0
    %871 = vmatprep.subr.mxu0 0.0
    %872 = vmatpush1.msra.mxu0 0.0
    %873 = vmatprep.subr.mxu0 0.0
    %874 = vmatpush1.msra.mxu0 0.0
    %875 = vmatprep.subr.mxu0 0.0
    %876 = vmatpush1.msra.mxu0 0.0
    %877 = vmatprep.subr.mxu0 0.0
    %878 = vmatpush1.msra.mxu0 0.0
    %879 = vmatprep.subr.mxu0 0.0
    %880 = vmatpush1.msra.mxu0 0.0
    %881 = vmatprep.subr.mxu0 0.0
    %882 = vmatpush1.msra.mxu0 0.0
    %883 = vmatprep.subr.mxu0 0.0
    %884 = vmatpush1.msra.mxu0 0.0
    %885 = vmatprep.subr.mxu0 0.0
    %886 = vmatpush1.msra.mxu0 0.0
    %887 = vmatprep.subr.mxu0 0.0
    %888 = vmatpush1.msra.mxu0 0.0
    %889 = vmatprep.mubr.f32.mxu0 0.0
    %890 = vmatmul.mubr.f32.gmra.mrb[0].mxu0 %v823
    %v891 = vpop.f32.mrb[0].mxu0
    %v892 = vadd.f32 0.0, %v891
    %v893 = vpop.f32.mrb[0].mxu0
    %894 = vdwg.mxu0
    %s895 = scalar_lea.vmem %s9, 6
    %896 = vst.msk [vmem:[%s895] sm:$0x3] %vm207, %v892
    %s897 = sld [smem:[#allocation2 + $0x3]]
    %898 = vmatprep.subr.mxu0 0.0
    %899 = vmatpush1.msra.mxu0 %v45
    %900 = vmatprep.subr.mxu0 0.0
    %901 = vmatpush1.msra.mxu0 %v46
    %902 = vmatprep.subr.mxu0 0.0
    %903 = vmatpush1.msra.mxu0 0.0
    %904 = vmatprep.subr.mxu0 0.0
    %905 = vmatpush1.msra.mxu0 0.0
    %906 = vmatprep.subr.mxu0 0.0
    %907 = vmatpush1.msra.mxu0 0.0
    %908 = vmatprep.subr.mxu0 0.0
    %909 = vmatpush1.msra.mxu0 0.0
    %910 = vmatprep.subr.mxu0 0.0
    %911 = vmatpush1.msra.mxu0 0.0
    %912 = vmatprep.subr.mxu0 0.0
    %913 = vmatpush1.msra.mxu0 0.0
    %914 = vmatprep.subr.mxu0 0.0
    %915 = vmatpush1.msra.mxu0 0.0
    %916 = vmatprep.subr.mxu0 0.0
    %917 = vmatpush1.msra.mxu0 0.0
    %918 = vmatprep.subr.mxu0 0.0
    %919 = vmatpush1.msra.mxu0 0.0
    %920 = vmatprep.subr.mxu0 0.0
    %921 = vmatpush1.msra.mxu0 0.0
    %922 = vmatprep.subr.mxu0 0.0
    %923 = vmatpush1.msra.mxu0 0.0
    %924 = vmatprep.subr.mxu0 0.0
    %925 = vmatpush1.msra.mxu0 0.0
    %926 = vmatprep.subr.mxu0 0.0
    %927 = vmatpush1.msra.mxu0 0.0
    %928 = vmatprep.subr.mxu0 0.0
    %929 = vmatpush1.msra.mxu0 0.0
    %930 = vmatprep.subr.mxu0 0.0
    %931 = vmatpush1.msra.mxu0 0.0
    %932 = vmatprep.subr.mxu0 0.0
    %933 = vmatpush1.msra.mxu0 0.0
    %934 = vmatprep.subr.mxu0 0.0
    %935 = vmatpush1.msra.mxu0 0.0
    %936 = vmatprep.subr.mxu0 0.0
    %937 = vmatpush1.msra.mxu0 0.0
    %938 = vmatprep.subr.mxu0 0.0
    %939 = vmatpush1.msra.mxu0 0.0
    %940 = vmatprep.subr.mxu0 0.0
    %941 = vmatpush1.msra.mxu0 0.0
    %942 = vmatprep.subr.mxu0 0.0
    %943 = vmatpush1.msra.mxu0 0.0
    %944 = vmatprep.subr.mxu0 0.0
    %945 = vmatpush1.msra.mxu0 0.0
    %946 = vmatprep.subr.mxu0 0.0
    %947 = vmatpush1.msra.mxu0 0.0
    %948 = vmatprep.subr.mxu0 0.0
    %949 = vmatpush1.msra.mxu0 0.0
    %950 = vmatprep.subr.mxu0 0.0
    %951 = vmatpush1.msra.mxu0 0.0
    %952 = vmatprep.subr.mxu0 0.0
    %953 = vmatpush1.msra.mxu0 0.0
    %954 = vmatprep.subr.mxu0 0.0
    %955 = vmatpush1.msra.mxu0 0.0
    %956 = vmatprep.subr.mxu0 0.0
    %957 = vmatpush1.msra.mxu0 0.0
    %958 = vmatprep.subr.mxu0 0.0
    %959 = vmatpush1.msra.mxu0 0.0
    %960 = vmatprep.subr.mxu0 0.0
    %961 = vmatpush1.msra.mxu0 0.0
    %962 = vmatprep.mubr.f32.mxu0 0.0
    %963 = vmatmul.mubr.f32.gmra.mrb[0].mxu0 %v823
    %v964 = vpop.f32.mrb[0].mxu0
    %v965 = vadd.f32 %v214, %v964
    %v966 = vpop.f32.mrb[0].mxu0
    %967 = vdwg.mxu0
    %v968 = vtanh.pop %v965
    %v970 = vsel %vm293, %v968, 0
    %972 = vmatprep.subr.mxu0 0.0
    %973 = vmatpush1.msra.mxu0 %v48
    %974 = vmatprep.subr.mxu0 0.0
    %975 = vmatpush1.msra.mxu0 %v49
    %976 = vmatprep.subr.mxu0 0.0
    %977 = vmatpush1.msra.mxu0 %v50
    %978 = vmatprep.subr.mxu0 0.0
    %979 = vmatpush1.msra.mxu0 %v51
    %980 = vmatprep.subr.mxu0 0.0
    %981 = vmatpush1.msra.mxu0 0.0
    %982 = vmatprep.subr.mxu0 0.0
    %983 = vmatpush1.msra.mxu0 0.0
    %984 = vmatprep.subr.mxu0 0.0
    %985 = vmatpush1.msra.mxu0 0.0
    %986 = vmatprep.subr.mxu0 0.0
    %987 = vmatpush1.msra.mxu0 0.0
    %988 = vmatprep.subr.mxu0 0.0
    %989 = vmatpush1.msra.mxu0 0.0
    %990 = vmatprep.subr.mxu0 0.0
    %991 = vmatpush1.msra.mxu0 0.0
    %992 = vmatprep.subr.mxu0 0.0
    %993 = vmatpush1.msra.mxu0 0.0
    %994 = vmatprep.subr.mxu0 0.0
    %995 = vmatpush1.msra.mxu0 0.0
    %996 = vmatprep.subr.mxu0 0.0
    %997 = vmatpush1.msra.mxu0 0.0
    %998 = vmatprep.subr.mxu0 0.0
    %999 = vmatpush1.msra.mxu0 0.0
    %1000 = vmatprep.subr.mxu0 0.0
    %1001 = vmatpush1.msra.mxu0 0.0
    %1002 = vmatprep.subr.mxu0 0.0
    %1003 = vmatpush1.msra.mxu0 0.0
    %1004 = vmatprep.subr.mxu0 0.0
    %1005 = vmatpush1.msra.mxu0 0.0
    %1006 = vmatprep.subr.mxu0 0.0
    %1007 = vmatpush1.msra.mxu0 0.0
    %1008 = vmatprep.subr.mxu0 0.0
    %1009 = vmatpush1.msra.mxu0 0.0
    %1010 = vmatprep.subr.mxu0 0.0
    %1011 = vmatpush1.msra.mxu0 0.0
    %1012 = vmatprep.subr.mxu0 0.0
    %1013 = vmatpush1.msra.mxu0 0.0
    %1014 = vmatprep.subr.mxu0 0.0
    %1015 = vmatpush1.msra.mxu0 0.0
    %1016 = vmatprep.subr.mxu0 0.0
    %1017 = vmatpush1.msra.mxu0 0.0
    %1018 = vmatprep.subr.mxu0 0.0
    %1019 = vmatpush1.msra.mxu0 0.0
    %1020 = vmatprep.subr.mxu0 0.0
    %1021 = vmatpush1.msra.mxu0 0.0
    %1022 = vmatprep.subr.mxu0 0.0
    %1023 = vmatpush1.msra.mxu0 0.0
    %1024 = vmatprep.subr.mxu0 0.0
    %1025 = vmatpush1.msra.mxu0 0.0
    %1026 = vmatprep.subr.mxu0 0.0
    %1027 = vmatpush1.msra.mxu0 0.0
    %1028 = vmatprep.subr.mxu0 0.0
    %1029 = vmatpush1.msra.mxu0 0.0
    %1030 = vmatprep.subr.mxu0 0.0
    %1031 = vmatpush1.msra.mxu0 0.0
    %1032 = vmatprep.subr.mxu0 0.0
    %1033 = vmatpush1.msra.mxu0 0.0
    %1034 = vmatprep.subr.mxu0 0.0
    %1035 = vmatpush1.msra.mxu0 0.0
    %1036 = vmatprep.mubr.f32.mxu0 0.0
    %1037 = vmatmul.mubr.f32.gmra.mrb[0].mxu0 %v970
    %v1038 = vpop.f32.mrb[0].mxu0
    %v1039 = vadd.f32 %v291, %v1038
    %v1040 = vpop.f32.mrb[0].mxu0
    %1041 = vdwg.mxu0
    %v1042 = vstv %s897
    %v1043 = vmul.f32 %v1042, %v1039
    %v1044 = vadd.f32 %v819, %v1043
    %s1045 = scalar_lea.vmem [#allocation5], 8
    %1046 = vst.msk [vmem:[%s1045] sm:$0x3] %vm131, %v1044
    %v1048 = vsel %vm133, %v1044, 0
    %1050 = vmatprep.subr.mxu0 0.0
    %1051 = vmatpush1.msra.mxu0 %v53
    %1052 = vmatprep.subr.mxu0 0.0
    %1053 = vmatpush1.msra.mxu0 %v54
    %1054 = vmatprep.subr.mxu0 0.0
    %1055 = vmatpush1.msra.mxu0 0.0
    %1056 = vmatprep.subr.mxu0 0.0
    %1057 = vmatpush1.msra.mxu0 0.0
    %1058 = vmatprep.subr.mxu0 0.0
    %1059 = vmatpush1.msra.mxu0 0.0
    %1060 = vmatprep.subr.mxu0 0.0
    %1061 = vmatpush1.msra.mxu0 0.0
    %1062 = vmatprep.subr.mxu0 0.0
    %1063 = vmatpush1.msra.mxu0 0.0
    %1064 = vmatprep.subr.mxu0 0.0
    %1065 = vmatpush1.msra.mxu0 0.0
    %1066 = vmatprep.subr.mxu0 0.0
    %1067 = vmatpush1.msra.mxu0 0.0
    %1068 = vmatprep.subr.mxu0 0.0
    %1069 = vmatpush1.msra.mxu0 0.0
    %1070 = vmatprep.subr.mxu0 0.0
    %1071 = vmatpush1.msra.mxu0 0.0
    %1072 = vmatprep.subr.mxu0 0.0
    %1073 = vmatpush1.msra.mxu0 0.0
    %1074 = vmatprep.subr.mxu0 0.0
    %1075 = vmatpush1.msra.mxu0 0.0
    %1076 = vmatprep.subr.mxu0 0.0
    %1077 = vmatpush1.msra.mxu0 0.0
    %1078 = vmatprep.subr.mxu0 0.0
    %1079 = vmatpush1.msra.mxu0 0.0
    %1080 = vmatprep.subr.mxu0 0.0
    %1081 = vmatpush1.msra.mxu0 0.0
    %1082 = vmatprep.subr.mxu0 0.0
    %1083 = vmatpush1.msra.mxu0 0.0
    %1084 = vmatprep.subr.mxu0 0.0
    %1085 = vmatpush1.msra.mxu0 0.0
    %1086 = vmatprep.subr.mxu0 0.0
    %1087 = vmatpush1.msra.mxu0 0.0
    %1088 = vmatprep.subr.mxu0 0.0
    %1089 = vmatpush1.msra.mxu0 0.0
    %1090 = vmatprep.subr.mxu0 0.0
    %1091 = vmatpush1.msra.mxu0 0.0
    %1092 = vmatprep.subr.mxu0 0.0
    %1093 = vmatpush1.msra.mxu0 0.0
    %1094 = vmatprep.subr.mxu0 0.0
    %1095 = vmatpush1.msra.mxu0 0.0
    %1096 = vmatprep.subr.mxu0 0.0
    %1097 = vmatpush1.msra.mxu0 0.0
    %1098 = vmatprep.subr.mxu0 0.0
    %1099 = vmatpush1.msra.mxu0 0.0
    %1100 = vmatprep.subr.mxu0 0.0
    %1101 = vmatpush1.msra.mxu0 0.0
    %1102 = vmatprep.subr.mxu0 0.0
    %1103 = vmatpush1.msra.mxu0 0.0
    %1104 = vmatprep.subr.mxu0 0.0
    %1105 = vmatpush1.msra.mxu0 0.0
    %1106 = vmatprep.subr.mxu0 0.0
    %1107 = vmatpush1.msra.mxu0 0.0
    %1108 = vmatprep.subr.mxu0 0.0
    %1109 = vmatpush1.msra.mxu0 0.0
    %1110 = vmatprep.subr.mxu0 0.0
    %1111 = vmatpush1.msra.mxu0 0.0
    %1112 = vmatprep.subr.mxu0 0.0
    %1113 = vmatpush1.msra.mxu0 0.0
    %1114 = vmatprep.mubr.f32.mxu0 0.0
    %1115 = vmatmul.mubr.f32.gmra.mrb[0].mxu0 %v1048
    %v1116 = vpop.f32.mrb[0].mxu0
    %v1117 = vadd.f32 0.0, %v1116
    %v1118 = vpop.f32.mrb[0].mxu0
    %1119 = vdwg.mxu0
    %s1120 = scalar_lea.vmem %s9, 8
    %1121 = vst.msk [vmem:[%s1120] sm:$0x3] %vm207, %v1117
    %s1122 = sld [smem:[#allocation2 + $0x4]]
    %1123 = vmatprep.subr.mxu0 0.0
    %1124 = vmatpush1.msra.mxu0 %v45
    %1125 = vmatprep.subr.mxu0 0.0
    %1126 = vmatpush1.msra.mxu0 %v46
    %1127 = vmatprep.subr.mxu0 0.0
    %1128 = vmatpush1.msra.mxu0 0.0
    %1129 = vmatprep.subr.mxu0 0.0
    %1130 = vmatpush1.msra.mxu0 0.0
    %1131 = vmatprep.subr.mxu0 0.0
    %1132 = vmatpush1.msra.mxu0 0.0
    %1133 = vmatprep.subr.mxu0 0.0
    %1134 = vmatpush1.msra.mxu0 0.0
    %1135 = vmatprep.subr.mxu0 0.0
    %1136 = vmatpush1.msra.mxu0 0.0
    %1137 = vmatprep.subr.mxu0 0.0
    %1138 = vmatpush1.msra.mxu0 0.0
    %1139 = vmatprep.subr.mxu0 0.0
    %1140 = vmatpush1.msra.mxu0 0.0
    %1141 = vmatprep.subr.mxu0 0.0
    %1142 = vmatpush1.msra.mxu0 0.0
    %1143 = vmatprep.subr.mxu0 0.0
    %1144 = vmatpush1.msra.mxu0 0.0
    %1145 = vmatprep.subr.mxu0 0.0
    %1146 = vmatpush1.msra.mxu0 0.0
    %1147 = vmatprep.subr.mxu0 0.0
    %1148 = vmatpush1.msra.mxu0 0.0
    %1149 = vmatprep.subr.mxu0 0.0
    %1150 = vmatpush1.msra.mxu0 0.0
    %1151 = vmatprep.subr.mxu0 0.0
    %1152 = vmatpush1.msra.mxu0 0.0
    %1153 = vmatprep.subr.mxu0 0.0
    %1154 = vmatpush1.msra.mxu0 0.0
    %1155 = vmatprep.subr.mxu0 0.0
    %1156 = vmatpush1.msra.mxu0 0.0
    %1157 = vmatprep.subr.mxu0 0.0
    %1158 = vmatpush1.msra.mxu0 0.0
    %1159 = vmatprep.subr.mxu0 0.0
    %1160 = vmatpush1.msra.mxu0 0.0
    %1161 = vmatprep.subr.mxu0 0.0
    %1162 = vmatpush1.msra.mxu0 0.0
    %1163 = vmatprep.subr.mxu0 0.0
    %1164 = vmatpush1.msra.mxu0 0.0
    %1165 = vmatprep.subr.mxu0 0.0
    %1166 = vmatpush1.msra.mxu0 0.0
    %1167 = vmatprep.subr.mxu0 0.0
    %1168 = vmatpush1.msra.mxu0 0.0
    %1169 = vmatprep.subr.mxu0 0.0
    %1170 = vmatpush1.msra.mxu0 0.0
    %1171 = vmatprep.subr.mxu0 0.0
    %1172 = vmatpush1.msra.mxu0 0.0
    %1173 = vmatprep.subr.mxu0 0.0
    %1174 = vmatpush1.msra.mxu0 0.0
    %1175 = vmatprep.subr.mxu0 0.0
    %1176 = vmatpush1.msra.mxu0 0.0
    %1177 = vmatprep.subr.mxu0 0.0
    %1178 = vmatpush1.msra.mxu0 0.0
    %1179 = vmatprep.subr.mxu0 0.0
    %1180 = vmatpush1.msra.mxu0 0.0
    %1181 = vmatprep.subr.mxu0 0.0
    %1182 = vmatpush1.msra.mxu0 0.0
    %1183 = vmatprep.subr.mxu0 0.0
    %1184 = vmatpush1.msra.mxu0 0.0
    %1185 = vmatprep.subr.mxu0 0.0
    %1186 = vmatpush1.msra.mxu0 0.0
    %1187 = vmatprep.mubr.f32.mxu0 0.0
    %1188 = vmatmul.mubr.f32.gmra.mrb[0].mxu0 %v1048
    %v1189 = vpop.f32.mrb[0].mxu0
    %v1190 = vadd.f32 %v214, %v1189
    %v1191 = vpop.f32.mrb[0].mxu0
    %1192 = vdwg.mxu0
    %v1193 = vtanh.pop %v1190
    %v1195 = vsel %vm293, %v1193, 0
    %1197 = vmatprep.subr.mxu0 0.0
    %1198 = vmatpush1.msra.mxu0 %v48
    %1199 = vmatprep.subr.mxu0 0.0
    %1200 = vmatpush1.msra.mxu0 %v49
    %1201 = vmatprep.subr.mxu0 0.0
    %1202 = vmatpush1.msra.mxu0 %v50
    %1203 = vmatprep.subr.mxu0 0.0
    %1204 = vmatpush1.msra.mxu0 %v51
    %1205 = vmatprep.subr.mxu0 0.0
    %1206 = vmatpush1.msra.mxu0 0.0
    %1207 = vmatprep.subr.mxu0 0.0
    %1208 = vmatpush1.msra.mxu0 0.0
    %1209 = vmatprep.subr.mxu0 0.0
    %1210 = vmatpush1.msra.mxu0 0.0
    %1211 = vmatprep.subr.mxu0 0.0
    %1212 = vmatpush1.msra.mxu0 0.0
    %1213 = vmatprep.subr.mxu0 0.0
    %1214 = vmatpush1.msra.mxu0 0.0
    %1215 = vmatprep.subr.mxu0 0.0
    %1216 = vmatpush1.msra.mxu0 0.0
    %1217 = vmatprep.subr.mxu0 0.0
    %1218 = vmatpush1.msra.mxu0 0.0
    %1219 = vmatprep.subr.mxu0 0.0
    %1220 = vmatpush1.msra.mxu0 0.0
    %1221 = vmatprep.subr.mxu0 0.0
    %1222 = vmatpush1.msra.mxu0 0.0
    %1223 = vmatprep.subr.mxu0 0.0
    %1224 = vmatpush1.msra.mxu0 0.0
    %1225 = vmatprep.subr.mxu0 0.0
    %1226 = vmatpush1.msra.mxu0 0.0
    %1227 = vmatprep.subr.mxu0 0.0
    %1228 = vmatpush1.msra.mxu0 0.0
    %1229 = vmatprep.subr.mxu0 0.0
    %1230 = vmatpush1.msra.mxu0 0.0
    %1231 = vmatprep.subr.mxu0 0.0
    %1232 = vmatpush1.msra.mxu0 0.0
    %1233 = vmatprep.subr.mxu0 0.0
    %1234 = vmatpush1.msra.mxu0 0.0
    %1235 = vmatprep.subr.mxu0 0.0
    %1236 = vmatpush1.msra.mxu0 0.0
    %1237 = vmatprep.subr.mxu0 0.0
    %1238 = vmatpush1.msra.mxu0 0.0
    %1239 = vmatprep.subr.mxu0 0.0
    %1240 = vmatpush1.msra.mxu0 0.0
    %1241 = vmatprep.subr.mxu0 0.0
    %1242 = vmatpush1.msra.mxu0 0.0
    %1243 = vmatprep.subr.mxu0 0.0
    %1244 = vmatpush1.msra.mxu0 0.0
    %1245 = vmatprep.subr.mxu0 0.0
    %1246 = vmatpush1.msra.mxu0 0.0
    %1247 = vmatprep.subr.mxu0 0.0
    %1248 = vmatpush1.msra.mxu0 0.0
    %1249 = vmatprep.subr.mxu0 0.0
    %1250 = vmatpush1.msra.mxu0 0.0
    %1251 = vmatprep.subr.mxu0 0.0
    %1252 = vmatpush1.msra.mxu0 0.0
    %1253 = vmatprep.subr.mxu0 0.0
    %1254 = vmatpush1.msra.mxu0 0.0
    %1255 = vmatprep.subr.mxu0 0.0
    %1256 = vmatpush1.msra.mxu0 0.0
    %1257 = vmatprep.subr.mxu0 0.0
    %1258 = vmatpush1.msra.mxu0 0.0
    %1259 = vmatprep.subr.mxu0 0.0
    %1260 = vmatpush1.msra.mxu0 0.0
    %1261 = vmatprep.mubr.f32.mxu0 0.0
    %1262 = vmatmul.mubr.f32.gmra.mrb[0].mxu0 %v1195
    %v1263 = vpop.f32.mrb[0].mxu0
    %v1264 = vadd.f32 %v291, %v1263
    %v1265 = vpop.f32.mrb[0].mxu0
    %1266 = vdwg.mxu0
    %v1267 = vstv %s1122
    %v1268 = vmul.f32 %v1267, %v1264
    %v1269 = vadd.f32 %v1044, %v1268
    %s1270 = scalar_lea.vmem [#allocation5], 10
    %1271 = vst.msk [vmem:[%s1270] sm:$0x3] %vm131, %v1269
    %v1273 = vsel %vm133, %v1269, 0
    %1275 = vmatprep.subr.mxu0 0.0
    %1276 = vmatpush1.msra.mxu0 %v53
    %1277 = vmatprep.subr.mxu0 0.0
    %1278 = vmatpush1.msra.mxu0 %v54
    %1279 = vmatprep.subr.mxu0 0.0
    %1280 = vmatpush1.msra.mxu0 0.0
    %1281 = vmatprep.subr.mxu0 0.0
    %1282 = vmatpush1.msra.mxu0 0.0
    %1283 = vmatprep.subr.mxu0 0.0
    %1284 = vmatpush1.msra.mxu0 0.0
    %1285 = vmatprep.subr.mxu0 0.0
    %1286 = vmatpush1.msra.mxu0 0.0
    %1287 = vmatprep.subr.mxu0 0.0
    %1288 = vmatpush1.msra.mxu0 0.0
    %1289 = vmatprep.subr.mxu0 0.0
    %1290 = vmatpush1.msra.mxu0 0.0
    %1291 = vmatprep.subr.mxu0 0.0
    %1292 = vmatpush1.msra.mxu0 0.0
    %1293 = vmatprep.subr.mxu0 0.0
    %1294 = vmatpush1.msra.mxu0 0.0
    %1295 = vmatprep.subr.mxu0 0.0
    %1296 = vmatpush1.msra.mxu0 0.0
    %1297 = vmatprep.subr.mxu0 0.0
    %1298 = vmatpush1.msra.mxu0 0.0
    %1299 = vmatprep.subr.mxu0 0.0
    %1300 = vmatpush1.msra.mxu0 0.0
    %1301 = vmatprep.subr.mxu0 0.0
    %1302 = vmatpush1.msra.mxu0 0.0
    %1303 = vmatprep.subr.mxu0 0.0
    %1304 = vmatpush1.msra.mxu0 0.0
    %1305 = vmatprep.subr.mxu0 0.0
    %1306 = vmatpush1.msra.mxu0 0.0
    %1307 = vmatprep.subr.mxu0 0.0
    %1308 = vmatpush1.msra.mxu0 0.0
    %1309 = vmatprep.subr.mxu0 0.0
    %1310 = vmatpush1.msra.mxu0 0.0
    %1311 = vmatprep.subr.mxu0 0.0
    %1312 = vmatpush1.msra.mxu0 0.0
    %1313 = vmatprep.subr.mxu0 0.0
    %1314 = vmatpush1.msra.mxu0 0.0
    %1315 = vmatprep.subr.mxu0 0.0
    %1316 = vmatpush1.msra.mxu0 0.0
    %1317 = vmatprep.subr.mxu0 0.0
    %1318 = vmatpush1.msra.mxu0 0.0
    %1319 = vmatprep.subr.mxu0 0.0
    %1320 = vmatpush1.msra.mxu0 0.0
    %1321 = vmatprep.subr.mxu0 0.0
    %1322 = vmatpush1.msra.mxu0 0.0
    %1323 = vmatprep.subr.mxu0 0.0
    %1324 = vmatpush1.msra.mxu0 0.0
    %1325 = vmatprep.subr.mxu0 0.0
    %1326 = vmatpush1.msra.mxu0 0.0
    %1327 = vmatprep.subr.mxu0 0.0
    %1328 = vmatpush1.msra.mxu0 0.0
    %1329 = vmatprep.subr.mxu0 0.0
    %1330 = vmatpush1.msra.mxu0 0.0
    %1331 = vmatprep.subr.mxu0 0.0
    %1332 = vmatpush1.msra.mxu0 0.0
    %1333 = vmatprep.subr.mxu0 0.0
    %1334 = vmatpush1.msra.mxu0 0.0
    %1335 = vmatprep.subr.mxu0 0.0
    %1336 = vmatpush1.msra.mxu0 0.0
    %1337 = vmatprep.subr.mxu0 0.0
    %1338 = vmatpush1.msra.mxu0 0.0
    %1339 = vmatprep.mubr.f32.mxu0 0.0
    %1340 = vmatmul.mubr.f32.gmra.mrb[0].mxu0 %v1273
    %v1341 = vpop.f32.mrb[0].mxu0
    %v1342 = vadd.f32 0.0, %v1341
    %v1343 = vpop.f32.mrb[0].mxu0
    %1344 = vdwg.mxu0
    %s1345 = scalar_lea.vmem %s9, 10
    %1346 = vst.msk [vmem:[%s1345] sm:$0x3] %vm207, %v1342
    %s1347 = sld [smem:[#allocation2 + $0x5]]
    %1348 = vmatprep.subr.mxu0 0.0
    %1349 = vmatpush1.msra.mxu0 %v45
    %1350 = vmatprep.subr.mxu0 0.0
    %1351 = vmatpush1.msra.mxu0 %v46
    %1352 = vmatprep.subr.mxu0 0.0
    %1353 = vmatpush1.msra.mxu0 0.0
    %1354 = vmatprep.subr.mxu0 0.0
    %1355 = vmatpush1.msra.mxu0 0.0
    %1356 = vmatprep.subr.mxu0 0.0
    %1357 = vmatpush1.msra.mxu0 0.0
    %1358 = vmatprep.subr.mxu0 0.0
    %1359 = vmatpush1.msra.mxu0 0.0
    %1360 = vmatprep.subr.mxu0 0.0
    %1361 = vmatpush1.msra.mxu0 0.0
    %1362 = vmatprep.subr.mxu0 0.0
    %1363 = vmatpush1.msra.mxu0 0.0
    %1364 = vmatprep.subr.mxu0 0.0
    %1365 = vmatpush1.msra.mxu0 0.0
    %1366 = vmatprep.subr.mxu0 0.0
    %1367 = vmatpush1.msra.mxu0 0.0
    %1368 = vmatprep.subr.mxu0 0.0
    %1369 = vmatpush1.msra.mxu0 0.0
    %1370 = vmatprep.subr.mxu0 0.0
    %1371 = vmatpush1.msra.mxu0 0.0
    %1372 = vmatprep.subr.mxu0 0.0
    %1373 = vmatpush1.msra.mxu0 0.0
    %1374 = vmatprep.subr.mxu0 0.0
    %1375 = vmatpush1.msra.mxu0 0.0
    %1376 = vmatprep.subr.mxu0 0.0
    %1377 = vmatpush1.msra.mxu0 0.0
    %1378 = vmatprep.subr.mxu0 0.0
    %1379 = vmatpush1.msra.mxu0 0.0
    %1380 = vmatprep.subr.mxu0 0.0
    %1381 = vmatpush1.msra.mxu0 0.0
    %1382 = vmatprep.subr.mxu0 0.0
    %1383 = vmatpush1.msra.mxu0 0.0
    %1384 = vmatprep.subr.mxu0 0.0
    %1385 = vmatpush1.msra.mxu0 0.0
    %1386 = vmatprep.subr.mxu0 0.0
    %1387 = vmatpush1.msra.mxu0 0.0
    %1388 = vmatprep.subr.mxu0 0.0
    %1389 = vmatpush1.msra.mxu0 0.0
    %1390 = vmatprep.subr.mxu0 0.0
    %1391 = vmatpush1.msra.mxu0 0.0
    %1392 = vmatprep.subr.mxu0 0.0
    %1393 = vmatpush1.msra.mxu0 0.0
    %1394 = vmatprep.subr.mxu0 0.0
    %1395 = vmatpush1.msra.mxu0 0.0
    %1396 = vmatprep.subr.mxu0 0.0
    %1397 = vmatpush1.msra.mxu0 0.0
    %1398 = vmatprep.subr.mxu0 0.0
    %1399 = vmatpush1.msra.mxu0 0.0
    %1400 = vmatprep.subr.mxu0 0.0
    %1401 = vmatpush1.msra.mxu0 0.0
    %1402 = vmatprep.subr.mxu0 0.0
    %1403 = vmatpush1.msra.mxu0 0.0
    %1404 = vmatprep.subr.mxu0 0.0
    %1405 = vmatpush1.msra.mxu0 0.0
    %1406 = vmatprep.subr.mxu0 0.0
    %1407 = vmatpush1.msra.mxu0 0.0
    %1408 = vmatprep.subr.mxu0 0.0
    %1409 = vmatpush1.msra.mxu0 0.0
    %1410 = vmatprep.subr.mxu0 0.0
    %1411 = vmatpush1.msra.mxu0 0.0
    %1412 = vmatprep.mubr.f32.mxu0 0.0
    %1413 = vmatmul.mubr.f32.gmra.mrb[0].mxu0 %v1273
    %v1414 = vpop.f32.mrb[0].mxu0
    %v1415 = vadd.f32 %v214, %v1414
    %v1416 = vpop.f32.mrb[0].mxu0
    %1417 = vdwg.mxu0
    %v1418 = vtanh.pop %v1415
    %v1420 = vsel %vm293, %v1418, 0
    %1422 = vmatprep.subr.mxu0 0.0
    %1423 = vmatpush1.msra.mxu0 %v48
    %1424 = vmatprep.subr.mxu0 0.0
    %1425 = vmatpush1.msra.mxu0 %v49
    %1426 = vmatprep.subr.mxu0 0.0
    %1427 = vmatpush1.msra.mxu0 %v50
    %1428 = vmatprep.subr.mxu0 0.0
    %1429 = vmatpush1.msra.mxu0 %v51
    %1430 = vmatprep.subr.mxu0 0.0
    %1431 = vmatpush1.msra.mxu0 0.0
    %1432 = vmatprep.subr.mxu0 0.0
    %1433 = vmatpush1.msra.mxu0 0.0
    %1434 = vmatprep.subr.mxu0 0.0
    %1435 = vmatpush1.msra.mxu0 0.0
    %1436 = vmatprep.subr.mxu0 0.0
    %1437 = vmatpush1.msra.mxu0 0.0
    %1438 = vmatprep.subr.mxu0 0.0
    %1439 = vmatpush1.msra.mxu0 0.0
    %1440 = vmatprep.subr.mxu0 0.0
    %1441 = vmatpush1.msra.mxu0 0.0
    %1442 = vmatprep.subr.mxu0 0.0
    %1443 = vmatpush1.msra.mxu0 0.0
    %1444 = vmatprep.subr.mxu0 0.0
    %1445 = vmatpush1.msra.mxu0 0.0
    %1446 = vmatprep.subr.mxu0 0.0
    %1447 = vmatpush1.msra.mxu0 0.0
    %1448 = vmatprep.subr.mxu0 0.0
    %1449 = vmatpush1.msra.mxu0 0.0
    %1450 = vmatprep.subr.mxu0 0.0
    %1451 = vmatpush1.msra.mxu0 0.0
    %1452 = vmatprep.subr.mxu0 0.0
    %1453 = vmatpush1.msra.mxu0 0.0
    %1454 = vmatprep.subr.mxu0 0.0
    %1455 = vmatpush1.msra.mxu0 0.0
    %1456 = vmatprep.subr.mxu0 0.0
    %1457 = vmatpush1.msra.mxu0 0.0
    %1458 = vmatprep.subr.mxu0 0.0
    %1459 = vmatpush1.msra.mxu0 0.0
    %1460 = vmatprep.subr.mxu0 0.0
    %1461 = vmatpush1.msra.mxu0 0.0
    %1462 = vmatprep.subr.mxu0 0.0
    %1463 = vmatpush1.msra.mxu0 0.0
    %1464 = vmatprep.subr.mxu0 0.0
    %1465 = vmatpush1.msra.mxu0 0.0
    %1466 = vmatprep.subr.mxu0 0.0
    %1467 = vmatpush1.msra.mxu0 0.0
    %1468 = vmatprep.subr.mxu0 0.0
    %1469 = vmatpush1.msra.mxu0 0.0
    %1470 = vmatprep.subr.mxu0 0.0
    %1471 = vmatpush1.msra.mxu0 0.0
    %1472 = vmatprep.subr.mxu0 0.0
    %1473 = vmatpush1.msra.mxu0 0.0
    %1474 = vmatprep.subr.mxu0 0.0
    %1475 = vmatpush1.msra.mxu0 0.0
    %1476 = vmatprep.subr.mxu0 0.0
    %1477 = vmatpush1.msra.mxu0 0.0
    %1478 = vmatprep.subr.mxu0 0.0
    %1479 = vmatpush1.msra.mxu0 0.0
    %1480 = vmatprep.subr.mxu0 0.0
    %1481 = vmatpush1.msra.mxu0 0.0
    %1482 = vmatprep.subr.mxu0 0.0
    %1483 = vmatpush1.msra.mxu0 0.0
    %1484 = vmatprep.subr.mxu0 0.0
    %1485 = vmatpush1.msra.mxu0 0.0
    %1486 = vmatprep.mubr.f32.mxu0 0.0
    %1487 = vmatmul.mubr.f32.gmra.mrb[0].mxu0 %v1420
    %v1488 = vpop.f32.mrb[0].mxu0
    %v1489 = vadd.f32 %v291, %v1488
    %v1490 = vpop.f32.mrb[0].mxu0
    %1491 = vdwg.mxu0
    %v1492 = vstv %s1347
    %v1493 = vmul.f32 %v1492, %v1489
    %v1494 = vadd.f32 %v1269, %v1493
    %s1495 = scalar_lea.vmem [#allocation5], 12
    %1496 = vst.msk [vmem:[%s1495] sm:$0x3] %vm131, %v1494
    %v1498 = vsel %vm133, %v1494, 0
    %1500 = vmatprep.subr.mxu0 0.0
    %1501 = vmatpush1.msra.mxu0 %v53
    %1502 = vmatprep.subr.mxu0 0.0
    %1503 = vmatpush1.msra.mxu0 %v54
    %1504 = vmatprep.subr.mxu0 0.0
    %1505 = vmatpush1.msra.mxu0 0.0
    %1506 = vmatprep.subr.mxu0 0.0
    %1507 = vmatpush1.msra.mxu0 0.0
    %1508 = vmatprep.subr.mxu0 0.0
    %1509 = vmatpush1.msra.mxu0 0.0
    %1510 = vmatprep.subr.mxu0 0.0
    %1511 = vmatpush1.msra.mxu0 0.0
    %1512 = vmatprep.subr.mxu0 0.0
    %1513 = vmatpush1.msra.mxu0 0.0
    %1514 = vmatprep.subr.mxu0 0.0
    %1515 = vmatpush1.msra.mxu0 0.0
    %1516 = vmatprep.subr.mxu0 0.0
    %1517 = vmatpush1.msra.mxu0 0.0
    %1518 = vmatprep.subr.mxu0 0.0
    %1519 = vmatpush1.msra.mxu0 0.0
    %1520 = vmatprep.subr.mxu0 0.0
    %1521 = vmatpush1.msra.mxu0 0.0
    %1522 = vmatprep.subr.mxu0 0.0
    %1523 = vmatpush1.msra.mxu0 0.0
    %1524 = vmatprep.subr.mxu0 0.0
    %1525 = vmatpush1.msra.mxu0 0.0
    %1526 = vmatprep.subr.mxu0 0.0
    %1527 = vmatpush1.msra.mxu0 0.0
    %1528 = vmatprep.subr.mxu0 0.0
    %1529 = vmatpush1.msra.mxu0 0.0
    %1530 = vmatprep.subr.mxu0 0.0
    %1531 = vmatpush1.msra.mxu0 0.0
    %1532 = vmatprep.subr.mxu0 0.0
    %1533 = vmatpush1.msra.mxu0 0.0
    %1534 = vmatprep.subr.mxu0 0.0
    %1535 = vmatpush1.msra.mxu0 0.0
    %1536 = vmatprep.subr.mxu0 0.0
    %1537 = vmatpush1.msra.mxu0 0.0
    %1538 = vmatprep.subr.mxu0 0.0
    %1539 = vmatpush1.msra.mxu0 0.0
    %1540 = vmatprep.subr.mxu0 0.0
    %1541 = vmatpush1.msra.mxu0 0.0
    %1542 = vmatprep.subr.mxu0 0.0
    %1543 = vmatpush1.msra.mxu0 0.0
    %1544 = vmatprep.subr.mxu0 0.0
    %1545 = vmatpush1.msra.mxu0 0.0
    %1546 = vmatprep.subr.mxu0 0.0
    %1547 = vmatpush1.msra.mxu0 0.0
    %1548 = vmatprep.subr.mxu0 0.0
    %1549 = vmatpush1.msra.mxu0 0.0
    %1550 = vmatprep.subr.mxu0 0.0
    %1551 = vmatpush1.msra.mxu0 0.0
    %1552 = vmatprep.subr.mxu0 0.0
    %1553 = vmatpush1.msra.mxu0 0.0
    %1554 = vmatprep.subr.mxu0 0.0
    %1555 = vmatpush1.msra.mxu0 0.0
    %1556 = vmatprep.subr.mxu0 0.0
    %1557 = vmatpush1.msra.mxu0 0.0
    %1558 = vmatprep.subr.mxu0 0.0
    %1559 = vmatpush1.msra.mxu0 0.0
    %1560 = vmatprep.subr.mxu0 0.0
    %1561 = vmatpush1.msra.mxu0 0.0
    %1562 = vmatprep.subr.mxu0 0.0
    %1563 = vmatpush1.msra.mxu0 0.0
    %1564 = vmatprep.mubr.f32.mxu0 0.0
    %1565 = vmatmul.mubr.f32.gmra.mrb[0].mxu0 %v1498
    %v1566 = vpop.f32.mrb[0].mxu0
    %v1567 = vadd.f32 0.0, %v1566
    %v1568 = vpop.f32.mrb[0].mxu0
    %1569 = vdwg.mxu0
    %s1570 = scalar_lea.vmem %s9, 12
    %1571 = vst.msk [vmem:[%s1570] sm:$0x3] %vm207, %v1567
    %s1572 = sld [smem:[#allocation2 + $0x6]]
    %1573 = vmatprep.subr.mxu0 0.0
    %1574 = vmatpush1.msra.mxu0 %v45
    %1575 = vmatprep.subr.mxu0 0.0
    %1576 = vmatpush1.msra.mxu0 %v46
    %1577 = vmatprep.subr.mxu0 0.0
    %1578 = vmatpush1.msra.mxu0 0.0
    %1579 = vmatprep.subr.mxu0 0.0
    %1580 = vmatpush1.msra.mxu0 0.0
    %1581 = vmatprep.subr.mxu0 0.0
    %1582 = vmatpush1.msra.mxu0 0.0
    %1583 = vmatprep.subr.mxu0 0.0
    %1584 = vmatpush1.msra.mxu0 0.0
    %1585 = vmatprep.subr.mxu0 0.0
    %1586 = vmatpush1.msra.mxu0 0.0
    %1587 = vmatprep.subr.mxu0 0.0
    %1588 = vmatpush1.msra.mxu0 0.0
    %1589 = vmatprep.subr.mxu0 0.0
    %1590 = vmatpush1.msra.mxu0 0.0
    %1591 = vmatprep.subr.mxu0 0.0
    %1592 = vmatpush1.msra.mxu0 0.0
    %1593 = vmatprep.subr.mxu0 0.0
    %1594 = vmatpush1.msra.mxu0 0.0
    %1595 = vmatprep.subr.mxu0 0.0
    %1596 = vmatpush1.msra.mxu0 0.0
    %1597 = vmatprep.subr.mxu0 0.0
    %1598 = vmatpush1.msra.mxu0 0.0
    %1599 = vmatprep.subr.mxu0 0.0
    %1600 = vmatpush1.msra.mxu0 0.0
    %1601 = vmatprep.subr.mxu0 0.0
    %1602 = vmatpush1.msra.mxu0 0.0
    %1603 = vmatprep.subr.mxu0 0.0
    %1604 = vmatpush1.msra.mxu0 0.0
    %1605 = vmatprep.subr.mxu0 0.0
    %1606 = vmatpush1.msra.mxu0 0.0
    %1607 = vmatprep.subr.mxu0 0.0
    %1608 = vmatpush1.msra.mxu0 0.0
    %1609 = vmatprep.subr.mxu0 0.0
    %1610 = vmatpush1.msra.mxu0 0.0
    %1611 = vmatprep.subr.mxu0 0.0
    %1612 = vmatpush1.msra.mxu0 0.0
    %1613 = vmatprep.subr.mxu0 0.0
    %1614 = vmatpush1.msra.mxu0 0.0
    %1615 = vmatprep.subr.mxu0 0.0
    %1616 = vmatpush1.msra.mxu0 0.0
    %1617 = vmatprep.subr.mxu0 0.0
    %1618 = vmatpush1.msra.mxu0 0.0
    %1619 = vmatprep.subr.mxu0 0.0
    %1620 = vmatpush1.msra.mxu0 0.0
    %1621 = vmatprep.subr.mxu0 0.0
    %1622 = vmatpush1.msra.mxu0 0.0
    %1623 = vmatprep.subr.mxu0 0.0
    %1624 = vmatpush1.msra.mxu0 0.0
    %1625 = vmatprep.subr.mxu0 0.0
    %1626 = vmatpush1.msra.mxu0 0.0
    %1627 = vmatprep.subr.mxu0 0.0
    %1628 = vmatpush1.msra.mxu0 0.0
    %1629 = vmatprep.subr.mxu0 0.0
    %1630 = vmatpush1.msra.mxu0 0.0
    %1631 = vmatprep.subr.mxu0 0.0
    %1632 = vmatpush1.msra.mxu0 0.0
    %1633 = vmatprep.subr.mxu0 0.0
    %1634 = vmatpush1.msra.mxu0 0.0
    %1635 = vmatprep.subr.mxu0 0.0
    %1636 = vmatpush1.msra.mxu0 0.0
    %1637 = vmatprep.mubr.f32.mxu0 0.0
    %1638 = vmatmul.mubr.f32.gmra.mrb[0].mxu0 %v1498
    %v1639 = vpop.f32.mrb[0].mxu0
    %v1640 = vadd.f32 %v214, %v1639
    %v1641 = vpop.f32.mrb[0].mxu0
    %1642 = vdwg.mxu0
    %v1643 = vtanh.pop %v1640
    %v1645 = vsel %vm293, %v1643, 0
    %1647 = vmatprep.subr.mxu0 0.0
    %1648 = vmatpush1.msra.mxu0 %v48
    %1649 = vmatprep.subr.mxu0 0.0
    %1650 = vmatpush1.msra.mxu0 %v49
    %1651 = vmatprep.subr.mxu0 0.0
    %1652 = vmatpush1.msra.mxu0 %v50
    %1653 = vmatprep.subr.mxu0 0.0
    %1654 = vmatpush1.msra.mxu0 %v51
    %1655 = vmatprep.subr.mxu0 0.0
    %1656 = vmatpush1.msra.mxu0 0.0
    %1657 = vmatprep.subr.mxu0 0.0
    %1658 = vmatpush1.msra.mxu0 0.0
    %1659 = vmatprep.subr.mxu0 0.0
    %1660 = vmatpush1.msra.mxu0 0.0
    %1661 = vmatprep.subr.mxu0 0.0
    %1662 = vmatpush1.msra.mxu0 0.0
    %1663 = vmatprep.subr.mxu0 0.0
    %1664 = vmatpush1.msra.mxu0 0.0
    %1665 = vmatprep.subr.mxu0 0.0
    %1666 = vmatpush1.msra.mxu0 0.0
    %1667 = vmatprep.subr.mxu0 0.0
    %1668 = vmatpush1.msra.mxu0 0.0
    %1669 = vmatprep.subr.mxu0 0.0
    %1670 = vmatpush1.msra.mxu0 0.0
    %1671 = vmatprep.subr.mxu0 0.0
    %1672 = vmatpush1.msra.mxu0 0.0
    %1673 = vmatprep.subr.mxu0 0.0
    %1674 = vmatpush1.msra.mxu0 0.0
    %1675 = vmatprep.subr.mxu0 0.0
    %1676 = vmatpush1.msra.mxu0 0.0
    %1677 = vmatprep.subr.mxu0 0.0
    %1678 = vmatpush1.msra.mxu0 0.0
    %1679 = vmatprep.subr.mxu0 0.0
    %1680 = vmatpush1.msra.mxu0 0.0
    %1681 = vmatprep.subr.mxu0 0.0
    %1682 = vmatpush1.msra.mxu0 0.0
    %1683 = vmatprep.subr.mxu0 0.0
    %1684 = vmatpush1.msra.mxu0 0.0
    %1685 = vmatprep.subr.mxu0 0.0
    %1686 = vmatpush1.msra.mxu0 0.0
    %1687 = vmatprep.subr.mxu0 0.0
    %1688 = vmatpush1.msra.mxu0 0.0
    %1689 = vmatprep.subr.mxu0 0.0
    %1690 = vmatpush1.msra.mxu0 0.0
    %1691 = vmatprep.subr.mxu0 0.0
    %1692 = vmatpush1.msra.mxu0 0.0
    %1693 = vmatprep.subr.mxu0 0.0
    %1694 = vmatpush1.msra.mxu0 0.0
    %1695 = vmatprep.subr.mxu0 0.0
    %1696 = vmatpush1.msra.mxu0 0.0
    %1697 = vmatprep.subr.mxu0 0.0
    %1698 = vmatpush1.msra.mxu0 0.0
    %1699 = vmatprep.subr.mxu0 0.0
    %1700 = vmatpush1.msra.mxu0 0.0
    %1701 = vmatprep.subr.mxu0 0.0
    %1702 = vmatpush1.msra.mxu0 0.0
    %1703 = vmatprep.subr.mxu0 0.0
    %1704 = vmatpush1.msra.mxu0 0.0
    %1705 = vmatprep.subr.mxu0 0.0
    %1706 = vmatpush1.msra.mxu0 0.0
    %1707 = vmatprep.subr.mxu0 0.0
    %1708 = vmatpush1.msra.mxu0 0.0
    %1709 = vmatprep.subr.mxu0 0.0
    %1710 = vmatpush1.msra.mxu0 0.0
    %1711 = vmatprep.mubr.f32.mxu0 0.0
    %1712 = vmatmul.mubr.f32.gmra.mrb[0].mxu0 %v1645
    %v1713 = vpop.f32.mrb[0].mxu0
    %v1714 = vadd.f32 %v291, %v1713
    %v1715 = vpop.f32.mrb[0].mxu0
    %1716 = vdwg.mxu0
    %v1717 = vstv %s1572
    %v1718 = vmul.f32 %v1717, %v1714
    %v1719 = vadd.f32 %v1494, %v1718
    %s1720 = scalar_lea.vmem [#allocation5], 14
    %1721 = vst.msk [vmem:[%s1720] sm:$0x3] %vm131, %v1719
    %v1723 = vsel %vm133, %v1719, 0
    %1725 = vmatprep.subr.mxu0 0.0
    %1726 = vmatpush1.msra.mxu0 %v53
    %1727 = vmatprep.subr.mxu0 0.0
    %1728 = vmatpush1.msra.mxu0 %v54
    %1729 = vmatprep.subr.mxu0 0.0
    %1730 = vmatpush1.msra.mxu0 0.0
    %1731 = vmatprep.subr.mxu0 0.0
    %1732 = vmatpush1.msra.mxu0 0.0
    %1733 = vmatprep.subr.mxu0 0.0
    %1734 = vmatpush1.msra.mxu0 0.0
    %1735 = vmatprep.subr.mxu0 0.0
    %1736 = vmatpush1.msra.mxu0 0.0
    %1737 = vmatprep.subr.mxu0 0.0
    %1738 = vmatpush1.msra.mxu0 0.0
    %1739 = vmatprep.subr.mxu0 0.0
    %1740 = vmatpush1.msra.mxu0 0.0
    %1741 = vmatprep.subr.mxu0 0.0
    %1742 = vmatpush1.msra.mxu0 0.0
    %1743 = vmatprep.subr.mxu0 0.0
    %1744 = vmatpush1.msra.mxu0 0.0
    %1745 = vmatprep.subr.mxu0 0.0
    %1746 = vmatpush1.msra.mxu0 0.0
    %1747 = vmatprep.subr.mxu0 0.0
    %1748 = vmatpush1.msra.mxu0 0.0
    %1749 = vmatprep.subr.mxu0 0.0
    %1750 = vmatpush1.msra.mxu0 0.0
    %1751 = vmatprep.subr.mxu0 0.0
    %1752 = vmatpush1.msra.mxu0 0.0
    %1753 = vmatprep.subr.mxu0 0.0
    %1754 = vmatpush1.msra.mxu0 0.0
    %1755 = vmatprep.subr.mxu0 0.0
    %1756 = vmatpush1.msra.mxu0 0.0
    %1757 = vmatprep.subr.mxu0 0.0
    %1758 = vmatpush1.msra.mxu0 0.0
    %1759 = vmatprep.subr.mxu0 0.0
    %1760 = vmatpush1.msra.mxu0 0.0
    %1761 = vmatprep.subr.mxu0 0.0
    %1762 = vmatpush1.msra.mxu0 0.0
    %1763 = vmatprep.subr.mxu0 0.0
    %1764 = vmatpush1.msra.mxu0 0.0
    %1765 = vmatprep.subr.mxu0 0.0
    %1766 = vmatpush1.msra.mxu0 0.0
    %1767 = vmatprep.subr.mxu0 0.0
    %1768 = vmatpush1.msra.mxu0 0.0
    %1769 = vmatprep.subr.mxu0 0.0
    %1770 = vmatpush1.msra.mxu0 0.0
    %1771 = vmatprep.subr.mxu0 0.0
    %1772 = vmatpush1.msra.mxu0 0.0
    %1773 = vmatprep.subr.mxu0 0.0
    %1774 = vmatpush1.msra.mxu0 0.0
    %1775 = vmatprep.subr.mxu0 0.0
    %1776 = vmatpush1.msra.mxu0 0.0
    %1777 = vmatprep.subr.mxu0 0.0
    %1778 = vmatpush1.msra.mxu0 0.0
    %1779 = vmatprep.subr.mxu0 0.0
    %1780 = vmatpush1.msra.mxu0 0.0
    %1781 = vmatprep.subr.mxu0 0.0
    %1782 = vmatpush1.msra.mxu0 0.0
    %1783 = vmatprep.subr.mxu0 0.0
    %1784 = vmatpush1.msra.mxu0 0.0
    %1785 = vmatprep.subr.mxu0 0.0
    %1786 = vmatpush1.msra.mxu0 0.0
    %1787 = vmatprep.subr.mxu0 0.0
    %1788 = vmatpush1.msra.mxu0 0.0
    %1789 = vmatprep.mubr.f32.mxu0 0.0
    %1790 = vmatmul.mubr.f32.gmra.mrb[0].mxu0 %v1723
    %v1791 = vpop.f32.mrb[0].mxu0
    %v1792 = vadd.f32 0.0, %v1791
    %v1793 = vpop.f32.mrb[0].mxu0
    %1794 = vdwg.mxu0
    %s1795 = scalar_lea.vmem %s9, 14
    %1796 = vst.msk [vmem:[%s1795] sm:$0x3] %vm207, %v1792
    // Predicated region
    $region38: #{tpu_custom_call.1} parent=1 // pred_check
      _
    $region39: #{tpu_custom_call.1} parent=1 // pred_check_branch
      %1798 = sbr.rel (0) target = $region41
    $region40: #{tpu_custom_call.1} parent=1 // pred_region
      %s1800 = ssub.s32 256, 256
      %1801 = vsyncadd [#allocation3], %s1800
      %s1802 = sshll.u32 [#allocation5], 4
      %s1803 = int_to_ptr.vmem [resolvable:$true] %s1802
      %1808 = dma.vmem_to_hbm [thread:$0]  %s1803, 256, %s8, [#allocation3], 32, 32, 2
    $region41: #{tpu_custom_call.1} parent=1 // pred_fallthru
      _
    // Predicated region
    $region42: #{tpu_custom_call.1} parent=1 // pred_check
      _
    $region43: #{tpu_custom_call.1} parent=1 // pred_check_branch
      %1810 = sbr.rel (0) target = $region45
    $region44: #{tpu_custom_call.1} parent=1 // pred_region
      _
    $region45: #{tpu_custom_call.1} parent=1 // pred_fallthru
      _
    // Predicated region
    $region46: #{tpu_custom_call.1} parent=1 // pred_check
      _
    $region47: #{tpu_custom_call.1} parent=1 // pred_check_branch
      %1812 = sbr.rel (0) target = $region49
    $region48: #{tpu_custom_call.1} parent=1 // pred_region
      %1813 = dma.done [#allocation3], 256
    $region49: #{tpu_custom_call.1} parent=1 // pred_fallthru
      _
    // Predicated region
    $region50: #{tpu_custom_call.1} parent=1 // pred_check
      _
    $region51: #{tpu_custom_call.1} parent=1 // pred_check_branch
      %1815 = sbr.rel (0) target = $region53
    $region52: #{tpu_custom_call.1} parent=1 // pred_region
      _
    $region53: #{tpu_custom_call.1} parent=1 // pred_fallthru
      _
    %1816 = vsyncpa [#allocation3], 1
    %1817 = vsyncpa [#allocation4], 1

</llo_original>
